<compile_context>
chip_gen: v6e
topology: v6e:2x2x1
jax: 0.10.0
libtpu: 0.0.40
codegen_flags: <defaults>
</compile_context>

<pallas_src>
import jax
import jax.numpy as jnp
from jax.experimental import pallas as pl
from jax.experimental.pallas import tpu as pltpu


def _round_up(x, m):
    return ((x + m - 1) // m) * m


def _make_block_kernel(W2p, tile_h, Cin, Cout, has_film, precision, eps=1e-12):
    """3x3 conv (9 aligned matmul taps) + RMSNorm + [FiLM] + SiLU, one row tile."""
    N = tile_h * W2p          # flattened output rows per tile (junk cols included)
    N_ext = N + 8             # extra rows so the dx=1,2 shifted reads stay in range

    def kernel(band_ref, w_ref, b_ref, cg_ref, *rest):
        # band_ref : (1, 1, (tile_h+3)*W2p, Cin)  padded row band, flattened spatial
        # w_ref    : (9, Cin, Cout)               conv weight, tap-major (k = dy*3+dx)
        # b_ref    : (1, Cout)                    conv bias (f32)
        # cg_ref   : (1|B, 1, Cout)               g*sqrt(Cout) [* (scale+1)] (f32)
        # sh_ref   : (B, 1, Cout)                 FiLM shift (only in FiLM variant)
        # out_ref  : (1, N, Cout)
        if has_film:
            sh_ref, out_ref = rest
        else:
            (out_ref,) = rest

        band = band_ref[0, 0]                              # ((tile_h+3)*W2p, Cin)

        def dx_partial(dx, rows):
            # Sum of the 3 dy taps for a fixed dx.  Every LHS window starts at
            # dy*W2p, a multiple of 8 sublanes, so no misaligned-slice relayouts.
            p = jnp.dot(band[0:rows], w_ref[dx],
                        preferred_element_type=jnp.float32, precision=precision)
            p = p + jnp.dot(band[W2p:W2p + rows], w_ref[3 + dx],
                            preferred_element_type=jnp.float32, precision=precision)
            p = p + jnp.dot(band[2 * W2p:2 * W2p + rows], w_ref[6 + dx],
                            preferred_element_type=jnp.float32, precision=precision)
            return p

        # dx = 0 taps land directly on the output rows; fold in the conv bias.
        acc = dx_partial(0, N) + b_ref[...]
        # dx = 1, 2 taps: computed over N_ext aligned rows, then added shifted up
        # by dx rows.  The shifted reads only spill into the cropped junk columns
        # at the very end of the tile, so no wrap handling is needed.
        p1 = dx_partial(1, N_ext)
        acc = acc + p1[1:N + 1]
        p2 = dx_partial(2, N_ext)
        acc = acc + p2[2:N + 2]

        # RMSNorm over the channel (lane) axis:
        #   F.normalize(acc, dim=C) * g * sqrt(Cout), FiLM (scale+1) pre-folded
        #   into cg;  max(||x||, eps) == sqrt(max(sum x^2, eps^2)).
        ssq = jnp.sum(acc * acc, axis=-1, keepdims=True)   # (N, 1)
        inv = jax.lax.rsqrt(jnp.maximum(ssq, eps * eps))
        y = acc * inv * cg_ref[0]
        if has_film:
            y = y + sh_ref[0]

        # SiLU
        y = y * jax.nn.sigmoid(y)

        # TODO(synk): nn.Dropout is the identity here (p=0.0 / eval mode); a
        # training-mode dropout would use pltpu.prng_seed / prng_random_bits.
        out_ref[0] = y.astype(out_ref.dtype)

    return kernel


def block_forward_nhwc(x_nhwc, weight, bias, g, scale=None, shift=None, *,
                       tile_h=None, compute_dtype=jnp.bfloat16,
                       out_dtype=jnp.float32, precision=None):
    """NHWC core: (B, H, W, Cin) -> (B, H, W, Cout).

    NHWC callers should use this directly and avoid the NCHW<->NHWC transposes
    of `block_forward` (each is a full HBM round trip of the activation).
    """
    B, H, W, Cin = x_nhwc.shape
    Cout = weight.shape[0]

    # Padded row width, multiple of 8 sublanes (and >= W+2) so the per-dy LHS
    # windows are sublane-aligned.  (bf16 packs 16 rows/vreg; the dy=1 window
    # may then be half-tile-offset, which is still far cheaper than the fully
    # misaligned per-tap slices.)
    W2p = _round_up(W + 2, 8)

    if tile_h is None:
        tile_h = max(8, 512 // W2p)          # ~512 flattened rows per grid step
    tile_h = max(1, min(int(tile_h), H))
    n_t = pl.cdiv(H, tile_h)
    Hp = n_t * tile_h
    rows_band = (tile_h + 3) * W2p
    N = tile_h * W2p

    # ---- wrapper-side layout plumbing (pad + overlapping row bands, bf16) ----
    xc = x_nhwc.astype(compute_dtype)
    x_pad = jnp.pad(xc, ((0, 0), (1, Hp - H + 2), (1, W2p - W - 1), (0, 0)))
    # Each tile gets its rows plus a 2-row halo (+1 spare row for the dx shifts).
    bands = jnp.stack(
        [x_pad[:, t * tile_h: t * tile_h + tile_h + 3] for t in range(n_t)], axis=1)
    bands = bands.reshape(B, n_t, rows_band, Cin)

    # Conv weight (Cout, Cin, 3, 3) -> tap-major (9, Cin, Cout), k = dy*3 + dx.
    w9 = jnp.transpose(weight, (2, 3, 1, 0)).reshape(9, Cin, Cout).astype(compute_dtype)
    b2 = bias.astype(jnp.float32).reshape(1, Cout)

    # Fold constants: g * sqrt(Cout), and (scale + 1) when FiLM is present.
    gain = g.astype(jnp.float32).reshape(1, Cout) * (float(Cout) ** 0.5)
    has_film = scale is not None
    if has_film:
        cg = (jnp.reshape(scale, (B, Cout)).astype(jnp.float32) + 1.0) * gain
        cg = cg.reshape(B, 1, Cout)
        sh = jnp.reshape(shift, (B, Cout)).astype(jnp.float32).reshape(B, 1, Cout)
        extra_in = (sh,)
        extra_specs = [pl.BlockSpec((1, 1, Cout), lambda b, t: (b, 0, 0))]
        cg_spec = pl.BlockSpec((1, 1, Cout), lambda b, t: (b, 0, 0))
    else:
        cg = gain.reshape(1, 1, Cout)
        extra_in = ()
        extra_specs = []
        cg_spec = pl.BlockSpec((1, 1, Cout), lambda b, t: (0, 0, 0))

    kernel = _make_block_kernel(W2p, tile_h, Cin, Cout, has_film, precision)

    # NOTE: for Cout < 128 the output lane axis is under-occupied; real
    # diffusion blocks use Cout >= 128 where this layout is lane-dense.
    out_flat = pl.pallas_call(
        kernel,
        out_shape=jax.ShapeDtypeStruct((B, Hp * W2p, Cout), out_dtype),
        grid=(B, n_t),
        in_specs=[
            pl.BlockSpec((1, 1, rows_band, Cin), lambda b, t: (b, t, 0, 0)),
            pl.BlockSpec((9, Cin, Cout), lambda b, t: (0, 0, 0)),
            pl.BlockSpec((1, Cout), lambda b, t: (0, 0)),
            cg_spec,
            *extra_specs,
        ],
        out_specs=pl.BlockSpec((1, N, Cout), lambda b, t: (b, t, 0)),
        compiler_params=pltpu.CompilerParams(
            dimension_semantics=("parallel", "parallel"),
            vmem_limit_bytes=32 * 1024 * 1024),
    )(bands, w9, b2, cg, *extra_in)

    # Drop the junk columns / padded rows.
    return out_flat.reshape(B, Hp, W2p, Cout)[:, :H, :W, :]


def block_forward(x, weight, bias, g, scale=None, shift=None, **kwargs):
    """Forward of `Block` with the PyTorch NCHW interface.

    x      : (B, Cin, H, W)
    weight : (Cout, Cin, 3, 3) conv weight
    bias   : (Cout,)           conv bias
    g      : (1, Cout, 1, 1)   RMSNorm gain
    scale, shift : optional (B, Cout) FiLM params (the `scale_shift` tuple)
    returns: (B, Cout, H, W)
    """
    x_nhwc = jnp.transpose(x, (0, 2, 3, 1))
    out = block_forward_nhwc(x_nhwc, weight, bias, g, scale, shift, **kwargs)
    return jnp.transpose(out, (0, 3, 1, 2))


def block_ref(x, weight, bias, g, scale=None, shift=None, eps=1e-12):
    """Pure-JAX reference matching the PyTorch Block.forward semantics."""
    B, Cin, H, W = x.shape
    Cout = weight.shape[0]
    y = jax.lax.conv_general_dilated(
        x.astype(jnp.float32), weight.astype(jnp.float32),
        window_strides=(1, 1), padding=((1, 1), (1, 1)),
        dimension_numbers=("NCHW", "OIHW", "NCHW"),
        precision=jax.lax.Precision.HIGHEST)
    y = y + bias.reshape(1, Cout, 1, 1)
    denom = jnp.maximum(jnp.sqrt(jnp.sum(y * y, axis=1, keepdims=True)), eps)
    y = (y / denom) * g.reshape(1, Cout, 1, 1) * (float(Cout) ** 0.5)
    if scale is not None:
        y = y * (jnp.reshape(scale, (B, Cout, 1, 1)) + 1.0) \
            + jnp.reshape(shift, (B, Cout, 1, 1))
    return y * jax.nn.sigmoid(y)


if __name__ == "__main__":
    key = jax.random.PRNGKey(0)
    k1, k2, k3, k4, k5, k6 = jax.random.split(key, 6)

    B, Cin, Cout, H, W = 2, 4, 8, 16, 16
    x = jax.random.normal(k1, (B, Cin, H, W), jnp.float32)
    weight = 0.2 * jax.random.normal(k2, (Cout, Cin, 3, 3), jnp.float32)
    bias = 0.1 * jax.random.normal(k3, (Cout,), jnp.float32)
    g = 1.0 + 0.1 * jax.random.normal(k4, (1, Cout, 1, 1), jnp.float32)
    scale = 0.1 * jax.random.normal(k5, (B, Cout), jnp.float32)
    shift = 0.1 * jax.random.normal(k6, (B, Cout), jnp.float32)

    # bf16-quantized inputs for tight comparison against the bf16-MXU fast path.
    xq = x.astype(jnp.bfloat16).astype(jnp.float32)
    wq = weight.astype(jnp.bfloat16).astype(jnp.float32)

    # 1) bf16 MXU path, FiLM branch, multi-row-tile grid (tile_h=8 -> 2 tiles).
    out1 = jax.block_until_ready(
        block_forward(x, weight, bias, g, scale, shift, tile_h=8))
    ref1 = block_ref(xq, wq, bias, g, scale, shift)
    assert out1.shape == (B, Cout, H, W)
    err1 = float(jnp.max(jnp.abs(out1 - ref1)))
    assert jnp.allclose(out1, ref1, atol=2e-3, rtol=2e-3), err1

    # 2) bf16 MXU path, scale_shift=None branch, default tiling (single tile).
    out2 = jax.block_until_ready(block_forward(x, weight, bias, g))
    ref2 = block_ref(xq, wq, bias, g)
    err2 = float(jnp.max(jnp.abs(out2 - ref2)))
    assert jnp.allclose(out2, ref2, atol=2e-3, rtol=2e-3), err2

    # 3) f32 debug path (validates the tiling / tap-shift logic exactly).
    out3 = jax.block_until_ready(block_forward(
        x, weight, bias, g, scale, shift, tile_h=8,
        compute_dtype=jnp.float32, precision=jax.lax.Precision.HIGHEST))
    ref3 = block_ref(x, weight, bias, g, scale, shift)
    err3 = float(jnp.max(jnp.abs(out3 - ref3)))
    assert jnp.allclose(out3, ref3, atol=1e-3, rtol=1e-3), err3

    print("KERNEL_OK")
</pallas_src>

<mosaic_0001>
module attributes {stable_mosaic.version = 11 : i64} {
  func.func @kernel(%arg0: i32, %arg1: i32, %arg2: memref<1x1x264x4xbf16, #tpu.memory_space<vmem>>, %arg3: memref<9x4x8xbf16, #tpu.memory_space<vmem>>, %arg4: memref<1x8xf32, #tpu.memory_space<vmem>>, %arg5: memref<1x1x8xf32, #tpu.memory_space<vmem>>, %arg6: memref<1x1x8xf32, #tpu.memory_space<vmem>>, %arg7: memref<1x192x8xf32, #tpu.memory_space<vmem>>) attributes {dimension_semantics = [#tpu.dimension_semantics<parallel>, #tpu.dimension_semantics<parallel>], iteration_bounds = array<i64: 2, 2>, scalar_prefetch = 0 : i64, scratch_operands = 0 : i64, tpu.core_type = #tpu.core_type<tc>, window_params = [{transform_indices = @transform_0, window_bounds = array<i64: 1, 1, 264, 4>}, {pipeline_mode = #tpu.pipeline_mode<synchronous>, transform_indices = @transform_1, window_bounds = array<i64: 9, 4, 8>}, {pipeline_mode = #tpu.pipeline_mode<synchronous>, transform_indices = @transform_2, window_bounds = array<i64: 1, 8>}, {transform_indices = @transform_3, window_bounds = array<i64: 1, 1, 8>}, {transform_indices = @transform_4, window_bounds = array<i64: 1, 1, 8>}, {transform_indices = @transform_5, window_bounds = array<i64: 1, 192, 8>}]} {
    %c0 = arith.constant 0 : index
    %c0_0 = arith.constant 0 : index
    %c0_1 = arith.constant 0 : index
    %c0_2 = arith.constant 0 : index
    %0 = vector.load %arg2[%c0, %c0_0, %c0_1, %c0_2] : memref<1x1x264x4xbf16, #tpu.memory_space<vmem>>, vector<1x1x264x4xbf16>
    %1 = vector.shape_cast %0 : vector<1x1x264x4xbf16> to vector<264x4xbf16>
    %2 = vector.extract_strided_slice %1 {offsets = [0, 0], sizes = [192, 4], strides = [1, 1]} : vector<264x4xbf16> to vector<192x4xbf16>
    %c0_3 = arith.constant 0 : index
    %c0_4 = arith.constant 0 : index
    %c0_5 = arith.constant 0 : index
    %3 = vector.load %arg3[%c0_3, %c0_4, %c0_5] : memref<9x4x8xbf16, #tpu.memory_space<vmem>>, vector<1x4x8xbf16>
    %4 = vector.shape_cast %3 : vector<1x4x8xbf16> to vector<4x8xbf16>
    %cst = arith.constant dense<0.000000e+00> : vector<192x8xf32>
    %5 = tpu.matmul %2, %4, %cst {dimension_numbers = #tpu.dot_dimension_numbers<[1], [0], [0], [1], [0, 0, 1, 1], [], []>} : vector<192x4xbf16>, vector<4x8xbf16>, vector<192x8xf32> -> vector<192x8xf32>
    %6 = vector.extract_strided_slice %1 {offsets = [24, 0], sizes = [192, 4], strides = [1, 1]} : vector<264x4xbf16> to vector<192x4xbf16>
    %c3 = arith.constant 3 : index
    %c0_6 = arith.constant 0 : index
    %c0_7 = arith.constant 0 : index
    %7 = vector.load %arg3[%c3, %c0_6, %c0_7] : memref<9x4x8xbf16, #tpu.memory_space<vmem>>, vector<1x4x8xbf16>
    %8 = vector.shape_cast %7 : vector<1x4x8xbf16> to vector<4x8xbf16>
    %cst_8 = arith.constant dense<0.000000e+00> : vector<192x8xf32>
    %9 = tpu.matmul %6, %8, %cst_8 {dimension_numbers = #tpu.dot_dimension_numbers<[1], [0], [0], [1], [0, 0, 1, 1], [], []>} : vector<192x4xbf16>, vector<4x8xbf16>, vector<192x8xf32> -> vector<192x8xf32>
    %10 = arith.addf %5, %9 : vector<192x8xf32>
    %11 = vector.extract_strided_slice %1 {offsets = [48, 0], sizes = [192, 4], strides = [1, 1]} : vector<264x4xbf16> to vector<192x4xbf16>
    %c6 = arith.constant 6 : index
    %c0_9 = arith.constant 0 : index
    %c0_10 = arith.constant 0 : index
    %12 = vector.load %arg3[%c6, %c0_9, %c0_10] : memref<9x4x8xbf16, #tpu.memory_space<vmem>>, vector<1x4x8xbf16>
    %13 = vector.shape_cast %12 : vector<1x4x8xbf16> to vector<4x8xbf16>
    %cst_11 = arith.constant dense<0.000000e+00> : vector<192x8xf32>
    %14 = tpu.matmul %11, %13, %cst_11 {dimension_numbers = #tpu.dot_dimension_numbers<[1], [0], [0], [1], [0, 0, 1, 1], [], []>} : vector<192x4xbf16>, vector<4x8xbf16>, vector<192x8xf32> -> vector<192x8xf32>
    %15 = arith.addf %10, %14 : vector<192x8xf32>
    %c0_12 = arith.constant 0 : index
    %c0_13 = arith.constant 0 : index
    %16 = vector.load %arg4[%c0_12, %c0_13] : memref<1x8xf32, #tpu.memory_space<vmem>>, vector<1x8xf32>
    %17 = vector.broadcast %16 : vector<1x8xf32> to vector<192x8xf32>
    %18 = arith.addf %15, %17 : vector<192x8xf32>
    %19 = vector.extract_strided_slice %1 {offsets = [0, 0], sizes = [200, 4], strides = [1, 1]} : vector<264x4xbf16> to vector<200x4xbf16>
    %c1 = arith.constant 1 : index
    %c0_14 = arith.constant 0 : index
    %c0_15 = arith.constant 0 : index
    %20 = vector.load %arg3[%c1, %c0_14, %c0_15] : memref<9x4x8xbf16, #tpu.memory_space<vmem>>, vector<1x4x8xbf16>
    %21 = vector.shape_cast %20 : vector<1x4x8xbf16> to vector<4x8xbf16>
    %cst_16 = arith.constant dense<0.000000e+00> : vector<200x8xf32>
    %22 = tpu.matmul %19, %21, %cst_16 {dimension_numbers = #tpu.dot_dimension_numbers<[1], [0], [0], [1], [0, 0, 1, 1], [], []>} : vector<200x4xbf16>, vector<4x8xbf16>, vector<200x8xf32> -> vector<200x8xf32>
    %23 = vector.extract_strided_slice %1 {offsets = [24, 0], sizes = [200, 4], strides = [1, 1]} : vector<264x4xbf16> to vector<200x4xbf16>
    %c4 = arith.constant 4 : index
    %c0_17 = arith.constant 0 : index
    %c0_18 = arith.constant 0 : index
    %24 = vector.load %arg3[%c4, %c0_17, %c0_18] : memref<9x4x8xbf16, #tpu.memory_space<vmem>>, vector<1x4x8xbf16>
    %25 = vector.shape_cast %24 : vector<1x4x8xbf16> to vector<4x8xbf16>
    %cst_19 = arith.constant dense<0.000000e+00> : vector<200x8xf32>
    %26 = tpu.matmul %23, %25, %cst_19 {dimension_numbers = #tpu.dot_dimension_numbers<[1], [0], [0], [1], [0, 0, 1, 1], [], []>} : vector<200x4xbf16>, vector<4x8xbf16>, vector<200x8xf32> -> vector<200x8xf32>
    %27 = arith.addf %22, %26 : vector<200x8xf32>
    %28 = vector.extract_strided_slice %1 {offsets = [48, 0], sizes = [200, 4], strides = [1, 1]} : vector<264x4xbf16> to vector<200x4xbf16>
    %c7 = arith.constant 7 : index
    %c0_20 = arith.constant 0 : index
    %c0_21 = arith.constant 0 : index
    %29 = vector.load %arg3[%c7, %c0_20, %c0_21] : memref<9x4x8xbf16, #tpu.memory_space<vmem>>, vector<1x4x8xbf16>
    %30 = vector.shape_cast %29 : vector<1x4x8xbf16> to vector<4x8xbf16>
    %cst_22 = arith.constant dense<0.000000e+00> : vector<200x8xf32>
    %31 = tpu.matmul %28, %30, %cst_22 {dimension_numbers = #tpu.dot_dimension_numbers<[1], [0], [0], [1], [0, 0, 1, 1], [], []>} : vector<200x4xbf16>, vector<4x8xbf16>, vector<200x8xf32> -> vector<200x8xf32>
    %32 = arith.addf %27, %31 : vector<200x8xf32>
    %33 = vector.extract_strided_slice %32 {offsets = [1, 0], sizes = [192, 8], strides = [1, 1]} : vector<200x8xf32> to vector<192x8xf32>
    %34 = arith.addf %18, %33 : vector<192x8xf32>
    %35 = vector.extract_strided_slice %1 {offsets = [0, 0], sizes = [200, 4], strides = [1, 1]} : vector<264x4xbf16> to vector<200x4xbf16>
    %c2 = arith.constant 2 : index
    %c0_23 = arith.constant 0 : index
    %c0_24 = arith.constant 0 : index
    %36 = vector.load %arg3[%c2, %c0_23, %c0_24] : memref<9x4x8xbf16, #tpu.memory_space<vmem>>, vector<1x4x8xbf16>
    %37 = vector.shape_cast %36 : vector<1x4x8xbf16> to vector<4x8xbf16>
    %cst_25 = arith.constant dense<0.000000e+00> : vector<200x8xf32>
    %38 = tpu.matmul %35, %37, %cst_25 {dimension_numbers = #tpu.dot_dimension_numbers<[1], [0], [0], [1], [0, 0, 1, 1], [], []>} : vector<200x4xbf16>, vector<4x8xbf16>, vector<200x8xf32> -> vector<200x8xf32>
    %39 = vector.extract_strided_slice %1 {offsets = [24, 0], sizes = [200, 4], strides = [1, 1]} : vector<264x4xbf16> to vector<200x4xbf16>
    %c5 = arith.constant 5 : index
    %c0_26 = arith.constant 0 : index
    %c0_27 = arith.constant 0 : index
    %40 = vector.load %arg3[%c5, %c0_26, %c0_27] : memref<9x4x8xbf16, #tpu.memory_space<vmem>>, vector<1x4x8xbf16>
    %41 = vector.shape_cast %40 : vector<1x4x8xbf16> to vector<4x8xbf16>
    %cst_28 = arith.constant dense<0.000000e+00> : vector<200x8xf32>
    %42 = tpu.matmul %39, %41, %cst_28 {dimension_numbers = #tpu.dot_dimension_numbers<[1], [0], [0], [1], [0, 0, 1, 1], [], []>} : vector<200x4xbf16>, vector<4x8xbf16>, vector<200x8xf32> -> vector<200x8xf32>
    %43 = arith.addf %38, %42 : vector<200x8xf32>
    %44 = vector.extract_strided_slice %1 {offsets = [48, 0], sizes = [200, 4], strides = [1, 1]} : vector<264x4xbf16> to vector<200x4xbf16>
    %c8 = arith.constant 8 : index
    %c0_29 = arith.constant 0 : index
    %c0_30 = arith.constant 0 : index
    %45 = vector.load %arg3[%c8, %c0_29, %c0_30] : memref<9x4x8xbf16, #tpu.memory_space<vmem>>, vector<1x4x8xbf16>
    %46 = vector.shape_cast %45 : vector<1x4x8xbf16> to vector<4x8xbf16>
    %cst_31 = arith.constant dense<0.000000e+00> : vector<200x8xf32>
    %47 = tpu.matmul %44, %46, %cst_31 {dimension_numbers = #tpu.dot_dimension_numbers<[1], [0], [0], [1], [0, 0, 1, 1], [], []>} : vector<200x4xbf16>, vector<4x8xbf16>, vector<200x8xf32> -> vector<200x8xf32>
    %48 = arith.addf %43, %47 : vector<200x8xf32>
    %49 = vector.extract_strided_slice %48 {offsets = [2, 0], sizes = [192, 8], strides = [1, 1]} : vector<200x8xf32> to vector<192x8xf32>
    %50 = arith.addf %34, %49 : vector<192x8xf32>
    %51 = arith.mulf %50, %50 : vector<192x8xf32>
    %cst_32 = arith.constant dense<0.000000e+00> : vector<192xf32>
    %52 = vector.multi_reduction <add>, %51, %cst_32 [1] : vector<192x8xf32> to vector<192xf32>
    %53 = vector.shape_cast %52 : vector<192xf32> to vector<192x1xf32>
    %cst_33 = arith.constant 1.000000e-24 : f32
    %54 = vector.broadcast %cst_33 : f32 to vector<192x1xf32>
    %55 = arith.maximumf %53, %54 : vector<192x1xf32>
    %56 = math.rsqrt %55 : vector<192x1xf32>
    %57 = vector.broadcast %56 : vector<192x1xf32> to vector<192x8xf32>
    %58 = arith.mulf %50, %57 : vector<192x8xf32>
    %c0_34 = arith.constant 0 : index
    %c0_35 = arith.constant 0 : index
    %c0_36 = arith.constant 0 : index
    %59 = vector.load %arg5[%c0_34, %c0_35, %c0_36] : memref<1x1x8xf32, #tpu.memory_space<vmem>>, vector<1x1x8xf32>
    %60 = vector.shape_cast %59 : vector<1x1x8xf32> to vector<1x8xf32>
    %61 = vector.broadcast %60 : vector<1x8xf32> to vector<192x8xf32>
    %62 = arith.mulf %58, %61 : vector<192x8xf32>
    %c0_37 = arith.constant 0 : index
    %c0_38 = arith.constant 0 : index
    %c0_39 = arith.constant 0 : index
    %63 = vector.load %arg6[%c0_37, %c0_38, %c0_39] : memref<1x1x8xf32, #tpu.memory_space<vmem>>, vector<1x1x8xf32>
    %64 = vector.shape_cast %63 : vector<1x1x8xf32> to vector<1x8xf32>
    %65 = vector.broadcast %64 : vector<1x8xf32> to vector<192x8xf32>
    %66 = arith.addf %62, %65 : vector<192x8xf32>
    %67 = arith.negf %66 : vector<192x8xf32>
    %68 = math.exp %67 : vector<192x8xf32>
    %cst_40 = arith.constant 1.000000e+00 : f32
    %69 = vector.broadcast %cst_40 : f32 to vector<192x8xf32>
    %70 = arith.addf %69, %68 : vector<192x8xf32>
    %71 = arith.divf %69, %70 : vector<192x8xf32>
    %72 = arith.mulf %66, %71 : vector<192x8xf32>
    %c0_41 = arith.constant 0 : index
    %c0_42 = arith.constant 0 : index
    %c0_43 = arith.constant 0 : index
    %73 = vector.load %arg7[%c0_41, %c0_42, %c0_43] : memref<1x192x8xf32, #tpu.memory_space<vmem>>, vector<1x192x8xf32>
    %74 = vector.shape_cast %73 : vector<1x192x8xf32> to vector<192x8xf32>
    %75 = vector.shape_cast %72 : vector<192x8xf32> to vector<1x192x8xf32>
    tpu.vector_store %arg7[%c0_41, %c0_42, %c0_43], %75 {strides = array<i32>} : memref<1x192x8xf32, #tpu.memory_space<vmem>>, vector<1x192x8xf32>,
    return
  }
  func.func @transform_0(%arg0: i32, %arg1: i32) -> (i32, i32, i32, i32) {
    %c0_i32 = arith.constant 0 : i32
    %c0_i32_0 = arith.constant 0 : i32
    %c0_i32_1 = arith.constant 0 : i32
    return %arg0, %arg1, %c0_i32, %c0_i32_0 : i32, i32, i32, i32
  }
  func.func @transform_1(%arg0: i32, %arg1: i32) -> (i32, i32, i32) {
    %c0_i32 = arith.constant 0 : i32
    %c0_i32_0 = arith.constant 0 : i32
    %c0_i32_1 = arith.constant 0 : i32
    %c0_i32_2 = arith.constant 0 : i32
    return %c0_i32, %c0_i32_0, %c0_i32_1 : i32, i32, i32
  }
  func.func @transform_2(%arg0: i32, %arg1: i32) -> (i32, i32) {
    %c0_i32 = arith.constant 0 : i32
    %c0_i32_0 = arith.constant 0 : i32
    %c0_i32_1 = arith.constant 0 : i32
    return %c0_i32, %c0_i32_0 : i32, i32
  }
  func.func @transform_3(%arg0: i32, %arg1: i32) -> (i32, i32, i32) {
    %c0_i32 = arith.constant 0 : i32
    %c0_i32_0 = arith.constant 0 : i32
    %c0_i32_1 = arith.constant 0 : i32
    return %arg0, %c0_i32, %c0_i32_0 : i32, i32, i32
  }
  func.func @transform_4(%arg0: i32, %arg1: i32) -> (i32, i32, i32) {
    %c0_i32 = arith.constant 0 : i32
    %c0_i32_0 = arith.constant 0 : i32
    %c0_i32_1 = arith.constant 0 : i32
    return %arg0, %c0_i32, %c0_i32_0 : i32, i32, i32
  }
  func.func @transform_5(%arg0: i32, %arg1: i32) -> (i32, i32, i32) {
    %c0_i32 = arith.constant 0 : i32
    %c0_i32_0 = arith.constant 0 : i32
    return %arg0, %arg1, %c0_i32 : i32, i32, i32
  }
}

</mosaic_0001>

<llo_original>
// kernel: tpu_custom_call.1
$region0: #{tpu_custom_call.1}
  #allocation0 [shape = 'u32[]', space=smem, size = 0x4, offset = 0x4, fixed_abs, tag = 'smem constant byte address 0x4 - core index']
  #allocation1 [shape = 'u32[144,128]{1,0:T(1,128)}', space=vmem, size = 0x12000, scoped, tag = 'internal scratch']
  %s0 = inlined_call_operand.vmem [shape: bf16[2,2,264,4], index: 0, kind: input, shape index: {}]
  %s1 = inlined_call_operand.vmem [shape: bf16[9,4,8], index: 1, kind: input, shape index: {}]
  %s2 = inlined_call_operand.vmem [shape: f32[1,8], index: 2, kind: input, shape index: {}]
  %s3 = inlined_call_operand.vmem [shape: f32[2,1,8], index: 3, kind: input, shape index: {}]
  %s4 = inlined_call_operand.vmem [shape: f32[2,1,8], index: 4, kind: input, shape index: {}]
  %s5 = inlined_call_operand.vmem [shape: f32[2,384,8], index: 5, kind: output, shape index: {}]
  %s6 = sld [smem:[#allocation0]]
  $region53: #{tpu_custom_call.1} parent=0
    _
  %s8 = ssub.s32 1, %s6
  %s9 = scalar_select 0, %s8, %s6
  loop: start=0, step=1, limit=6
  $region2: #{tpu_custom_call.1} parent=0 // loop_pre_header
    _
  $region3: #{tpu_custom_call.1} parent=0 // loop_header
    %s11 = sphi 0, %s15
    %p12 = scmp.ge.s32.totalorder %s11, 6
    %s18 = sphi 0, %s30
    %s19 = sphi 0, %s26
    %s20 = sphi 0, %s18
    %s21 = sphi 0, %s19
    %s22 = sphi 0, %s20
    %s23 = sphi 0, %s21
    %s35 = sphi 0, %s37
    %s38 = sphi 0, %s35
    %s39 = sphi 0, %s38
    %s55 = sphi 0, %s39
    %s59 = sphi 0, %s59
    %s61 = sphi 0, %s59
    %s62 = sphi 0, %s61
    %s76 = sphi 0, %s62
    %s80 = sphi 0, %s80
    %s82 = sphi 0, %s80
    %s83 = sphi 0, %s82
    %s97 = sphi 0, %s83
    %s103 = sphi 0, %s105
    %s106 = sphi 0, %s103
    %s107 = sphi 0, %s106
    %s123 = sphi 0, %s107
    %s129 = sphi 0, %s131
    %s132 = sphi 0, %s129
    %s133 = sphi 0, %s132
    %s149 = sphi 0, %s133
    %s157 = sphi 0, %s159
    %s160 = sphi 0, %s157
    %s161 = sphi 0, %s160
    %s177 = sphi 0, %s161
  $region4: #{tpu_custom_call.1} parent=0 // loop_header_branch
    %14 = sbr.rel (%p12) target = $region8
  $region5: #{tpu_custom_call.1} parent=0 // loop_body
    %s16 = ssub.s32 %s11, 1
    %s17 = ssub.s32 %s11, 2
    %s24 = sadd.s32 1, %s19
    %p25 = scmp.ge.s32.totalorder %s24, 2
    %s26 = scalar_select %p25, 0, %s24
    %s27 = sadd.s32 1, %s18
    %s28 = scalar_select %p25, %s27, %s18
    %p29 = scmp.ge.s32.totalorder %s28, 2
    %s30 = scalar_select %p29, 0, %s28
    %s31 = ssub.s32 %s18, %s30
    %s32 = ssub.s32 %s19, %s26
    %s33 = sor.u32 %s31, %s32
    %p34 = scmp.eq.s32.totalorder %s33, 0
    %s36 = sadd.s32 %s35, 1
    %s37 = scalar_select %p34, %s35, %s36
    %p40 = pneg %p34
    %p41 = scmp.eq.s32.totalorder %s11, 3
    %p42 = por %p40, %p41
    %p43 = scmp.ne.s32.totalorder %s35, %s38
    %p44 = scmp.eq.s32.totalorder %s11, 0
    %p45 = por %p43, %p44
    %p46 = scmp.ne.s32.totalorder %s35, %s38
    %p47 = scmp.eq.s32.totalorder %s16, 3
    %p48 = por %p46, %p47
    %p49 = scmp.ne.s32.totalorder %s38, %s39
    %p50 = scmp.eq.s32.totalorder %s16, 0
    %p51 = por %p49, %p50
    %p52 = scmp.ne.s32.totalorder %s38, %s39
    %p53 = scmp.eq.s32.totalorder %s17, 3
    %p54 = por %p52, %p53
    %p56 = scmp.ne.s32.totalorder %s39, %s55
    %p57 = scmp.eq.s32.totalorder %s17, 0
    %p58 = por %p56, %p57
    %s60 = sadd.s32 %s59, 1
    %p63 = scmp.eq.s32.totalorder %s11, 3
    %p64 = scmp.ne.s32.totalorder %s59, %s61
    %p65 = scmp.eq.s32.totalorder %s11, 0
    %p66 = por %p64, %p65
    %p67 = scmp.ne.s32.totalorder %s59, %s61
    %p68 = scmp.eq.s32.totalorder %s16, 3
    %p69 = por %p67, %p68
    %p70 = scmp.ne.s32.totalorder %s61, %s62
    %p71 = scmp.eq.s32.totalorder %s16, 0
    %p72 = por %p70, %p71
    %p73 = scmp.ne.s32.totalorder %s61, %s62
    %p74 = scmp.eq.s32.totalorder %s17, 3
    %p75 = por %p73, %p74
    %p77 = scmp.ne.s32.totalorder %s62, %s76
    %p78 = scmp.eq.s32.totalorder %s17, 0
    %p79 = por %p77, %p78
    %s81 = sadd.s32 %s80, 1
    %p84 = scmp.eq.s32.totalorder %s11, 3
    %p85 = scmp.ne.s32.totalorder %s80, %s82
    %p86 = scmp.eq.s32.totalorder %s11, 0
    %p87 = por %p85, %p86
    %p88 = scmp.ne.s32.totalorder %s80, %s82
    %p89 = scmp.eq.s32.totalorder %s16, 3
    %p90 = por %p88, %p89
    %p91 = scmp.ne.s32.totalorder %s82, %s83
    %p92 = scmp.eq.s32.totalorder %s16, 0
    %p93 = por %p91, %p92
    %p94 = scmp.ne.s32.totalorder %s82, %s83
    %p95 = scmp.eq.s32.totalorder %s17, 3
    %p96 = por %p94, %p95
    %p98 = scmp.ne.s32.totalorder %s83, %s97
    %p99 = scmp.eq.s32.totalorder %s17, 0
    %p100 = por %p98, %p99
    %s101 = ssub.s32 %s18, %s30
    %p102 = scmp.eq.s32.totalorder %s101, 0
    %s104 = sadd.s32 %s103, 1
    %s105 = scalar_select %p102, %s103, %s104
    %p108 = pneg %p102
    %p109 = scmp.eq.s32.totalorder %s11, 3
    %p110 = por %p108, %p109
    %p111 = scmp.ne.s32.totalorder %s103, %s106
    %p112 = scmp.eq.s32.totalorder %s11, 0
    %p113 = por %p111, %p112
    %p114 = scmp.ne.s32.totalorder %s103, %s106
    %p115 = scmp.eq.s32.totalorder %s16, 3
    %p116 = por %p114, %p115
    %p117 = scmp.ne.s32.totalorder %s106, %s107
    %p118 = scmp.eq.s32.totalorder %s16, 0
    %p119 = por %p117, %p118
    %p120 = scmp.ne.s32.totalorder %s106, %s107
    %p121 = scmp.eq.s32.totalorder %s17, 3
    %p122 = por %p120, %p121
    %p124 = scmp.ne.s32.totalorder %s107, %s123
    %p125 = scmp.eq.s32.totalorder %s17, 0
    %p126 = por %p124, %p125
    %s127 = ssub.s32 %s18, %s30
    %p128 = scmp.eq.s32.totalorder %s127, 0
    %s130 = sadd.s32 %s129, 1
    %s131 = scalar_select %p128, %s129, %s130
    %p134 = pneg %p128
    %p135 = scmp.eq.s32.totalorder %s11, 3
    %p136 = por %p134, %p135
    %p137 = scmp.ne.s32.totalorder %s129, %s132
    %p138 = scmp.eq.s32.totalorder %s11, 0
    %p139 = por %p137, %p138
    %p140 = scmp.ne.s32.totalorder %s129, %s132
    %p141 = scmp.eq.s32.totalorder %s16, 3
    %p142 = por %p140, %p141
    %p143 = scmp.ne.s32.totalorder %s132, %s133
    %p144 = scmp.eq.s32.totalorder %s16, 0
    %p145 = por %p143, %p144
    %p146 = scmp.ne.s32.totalorder %s132, %s133
    %p147 = scmp.eq.s32.totalorder %s17, 3
    %p148 = por %p146, %p147
    %p150 = scmp.ne.s32.totalorder %s133, %s149
    %p151 = scmp.eq.s32.totalorder %s17, 0
    %p152 = por %p150, %p151
    %s153 = ssub.s32 %s18, %s30
    %s154 = ssub.s32 %s19, %s26
    %s155 = sor.u32 %s153, %s154
    %p156 = scmp.eq.s32.totalorder %s155, 0
    %s158 = sadd.s32 %s157, 1
    %s159 = scalar_select %p156, %s157, %s158
    %p162 = pneg %p156
    %p163 = scmp.eq.s32.totalorder %s11, 3
    %p164 = por %p162, %p163
    %p165 = scmp.ne.s32.totalorder %s157, %s160
    %p166 = scmp.eq.s32.totalorder %s11, 0
    %p167 = por %p165, %p166
    %p168 = scmp.ne.s32.totalorder %s157, %s160
    %p169 = scmp.eq.s32.totalorder %s16, 3
    %p170 = por %p168, %p169
    %p171 = scmp.ne.s32.totalorder %s160, %s161
    %p172 = scmp.eq.s32.totalorder %s16, 0
    %p173 = por %p171, %p172
    %p174 = scmp.ne.s32.totalorder %s160, %s161
    %p175 = scmp.eq.s32.totalorder %s17, 3
    %p176 = por %p174, %p175
    %p178 = scmp.ne.s32.totalorder %s161, %s177
    %p179 = scmp.eq.s32.totalorder %s17, 0
    %p180 = por %p178, %p179
    %p181 = scmp.le.s32.totalorder 1, %s11
    %p182 = scmp.lt.s32.totalorder %s11, 5
    %p183 = pnand %p181, %p182
    %p184 = pneg %p183
    // Predicated region
    $region9: #{tpu_custom_call.1} parent=5 // pred_check
      _
    $region10: #{tpu_custom_call.1} parent=5 // pred_check_branch
      %186 = sbr.rel (%p183) target = $region12
    $region11: #{tpu_custom_call.1} parent=5 // pred_region
      %s187 = ssub.s32 %s11, 1
      // Predicated region
      $region13: #{tpu_custom_call.1} parent=11 // pred_check
        %p188 = pneg %p72
      $region14: #{tpu_custom_call.1} parent=11 // pred_check_branch
        %190 = sbr.rel (%p188) target = $region16
      $region15: #{tpu_custom_call.1} parent=11 // pred_region
        _
      $region16: #{tpu_custom_call.1} parent=11 // pred_fallthru
        _
      // Predicated region
      $region17: #{tpu_custom_call.1} parent=11 // pred_check
        %p191 = pneg %p93
      $region18: #{tpu_custom_call.1} parent=11 // pred_check_branch
        %193 = sbr.rel (%p191) target = $region20
      $region19: #{tpu_custom_call.1} parent=11 // pred_region
        _
      $region20: #{tpu_custom_call.1} parent=11 // pred_fallthru
        _
    $region12: #{tpu_custom_call.1} parent=5 // pred_fallthru
      _
    %p194 = scmp.lt.s32.totalorder %s11, 4
    // Predicated region
    $region21: #{tpu_custom_call.1} parent=5 // pred_check
      %p195 = pneg %p194
    $region22: #{tpu_custom_call.1} parent=5 // pred_check_branch
      %197 = sbr.rel (%p195) target = $region24
    $region23: #{tpu_custom_call.1} parent=5 // pred_region
      // Predicated region
      $region25: #{tpu_custom_call.1} parent=23 // pred_check
        %p198 = pneg %p45
      $region26: #{tpu_custom_call.1} parent=23 // pred_check_branch
        %200 = sbr.rel (%p198) target = $region28
      $region27: #{tpu_custom_call.1} parent=23 // pred_region
        %p201 = scmp.lt.s32.totalorder %s18, 1
        %s202 = scalar_select %p201, %s18, 1
        %p203 = scmp.lt.s32.totalorder %s19, 1
        %s204 = scalar_select %p203, %s19, 1
        %s205 = smul.addr %s204, 33
        %s206 = smul.addr %s202, 66
        %s207 = sadd.s32 %s205, %s206
        %s208 = smul.addr %s207, 4
        %s209 = scalar_lea.vmem %s0, %s208
      $region28: #{tpu_custom_call.1} parent=23 // pred_fallthru
        _
      // Predicated region
      $region29: #{tpu_custom_call.1} parent=23 // pred_check
        %p210 = pneg %p113
      $region30: #{tpu_custom_call.1} parent=23 // pred_check_branch
        %212 = sbr.rel (%p210) target = $region32
      $region31: #{tpu_custom_call.1} parent=23 // pred_region
        %p213 = scmp.lt.s32.totalorder %s18, 1
        %s214 = scalar_select %p213, %s18, 1
        %s215 = scalar_lea.vmem %s3, %s214
      $region32: #{tpu_custom_call.1} parent=23 // pred_fallthru
        _
      // Predicated region
      $region33: #{tpu_custom_call.1} parent=23 // pred_check
        %p216 = pneg %p139
      $region34: #{tpu_custom_call.1} parent=23 // pred_check_branch
        %218 = sbr.rel (%p216) target = $region36
      $region35: #{tpu_custom_call.1} parent=23 // pred_region
        %p219 = scmp.lt.s32.totalorder %s18, 1
        %s220 = scalar_select %p219, %s18, 1
        %s221 = scalar_lea.vmem %s4, %s220
      $region36: #{tpu_custom_call.1} parent=23 // pred_fallthru
        _
    $region24: #{tpu_custom_call.1} parent=5 // pred_fallthru
      _
    %p222 = scmp.le.s32.totalorder 1, %s11
    %p223 = scmp.lt.s32.totalorder %s11, 5
    %p224 = pnand %p222, %p223
    %p225 = pneg %p224
    // Predicated region
    $region37: #{tpu_custom_call.1} parent=5 // pred_check
      _
    $region38: #{tpu_custom_call.1} parent=5 // pred_check_branch
      %227 = sbr.rel (%p224) target = $region40
    $region39: #{tpu_custom_call.1} parent=5 // pred_region
      %s228 = ssub.s32 %s11, 1
      %p229 = scmp.lt.s32.totalorder %s20, 1
      %s230 = scalar_select %p229, %s20, 1
      %p231 = scmp.lt.s32.totalorder %s21, 1
      %s232 = scalar_select %p231, %s21, 1
      %s233 = smul.addr %s232, 33
      %s234 = smul.addr %s230, 66
      %s235 = sadd.s32 %s233, %s234
      %s236 = smul.addr %s235, 4
      %s237 = scalar_lea.vmem %s0, %s236
      %p238 = pneg %p51
      %p239 = pneg %p48
      %p240 = pneg %p72
      %p241 = pneg %p69
      %p242 = pneg %p93
      %p243 = pneg %p90
      %p244 = scmp.lt.s32.totalorder %s20, 1
      %s245 = scalar_select %p244, %s20, 1
      %s246 = scalar_lea.vmem %s3, %s245
      %p247 = pneg %p119
      %p248 = pneg %p116
      %p249 = scmp.lt.s32.totalorder %s20, 1
      %s250 = scalar_select %p249, %s20, 1
      %s251 = scalar_lea.vmem %s4, %s250
      %p252 = pneg %p145
      %p253 = pneg %p142
      %p254 = pneg %p173
      %p255 = pneg %p170
      %s256 = smul.u32 24, %s21
      %p257 = scmp.lt.s32.totalorder %s20, 1
      %s258 = scalar_select %p257, %s20, 1
      %p259 = scmp.lt.s32.totalorder %s256, 47
      %s260 = scalar_select %p259, %s256, 47
      %s261 = smul.addr %s258, 48
      %s262 = sadd.s32 %s260, %s261
      %s263 = smul.addr %s262, 8
      %s264 = scalar_lea.vmem %s5, %s263
      %p265 = scmp.lt.s32.totalorder %s20, 1
      %s266 = scalar_select %p265, %s20, 1
      %p267 = scmp.lt.s32.totalorder %s21, 1
      %s268 = scalar_select %p267, %s21, 1
      %s269 = smul.addr %s268, 33
      %s270 = smul.addr %s266, 66
      %s271 = sadd.s32 %s269, %s270
      %s272 = smul.addr %s271, 4
      %s273 = scalar_lea.vmem %s0, %s272
      %p274 = scmp.lt.s32.totalorder %s20, 1
      %s275 = scalar_select %p274, %s20, 1
      %s276 = scalar_lea.vmem %s3, %s275
      %p277 = scmp.lt.s32.totalorder %s20, 1
      %s278 = scalar_select %p277, %s20, 1
      %s279 = scalar_lea.vmem %s4, %s278
      %s280 = smul.u32 24, %s21
      %p281 = scmp.lt.s32.totalorder %s20, 1
      %s282 = scalar_select %p281, %s20, 1
      %p283 = scmp.lt.s32.totalorder %s280, 47
      %s284 = scalar_select %p283, %s280, 47
      %s285 = smul.addr %s282, 48
      %s286 = sadd.s32 %s284, %s285
      %s287 = smul.addr %s286, 8
      %s288 = scalar_lea.vmem %s5, %s287
      %s289 = smul.u32 24, %s21
      %v291 = vld [vmem:[%s273] sm:$0xf]
      %v292 = vld [vmem:[%s273 + $0x4] sm:$0xf]
      %v293 = vld [vmem:[%s273 + $0x8] sm:$0xf]
      %v294 = vld [vmem:[%s273 + $0xc] sm:$0xf]
      %v295 = vld [vmem:[%s273 + $0x10] sm:$0xf]
      %v296 = vld [vmem:[%s273 + $0x14] sm:$0xf]
      %v297 = vld [vmem:[%s273 + $0x18] sm:$0xf]
      %v298 = vld [vmem:[%s273 + $0x1c] sm:$0xf]
      %v299 = vld [vmem:[%s273 + $0x20] sm:$0xf]
      %v300 = vld [vmem:[%s273 + $0x24] sm:$0xf]
      %v301 = vld [vmem:[%s273 + $0x28] sm:$0xf]
      %v302 = vld [vmem:[%s273 + $0x2c] sm:$0xf]
      %v303 = vld [vmem:[%s273 + $0x30] sm:$0xf]
      %v304 = vld [vmem:[%s273 + $0x34] sm:$0xf]
      %v305 = vld [vmem:[%s273 + $0x38] sm:$0xf]
      %v306 = vld [vmem:[%s273 + $0x3c] sm:$0xf]
      %v307 = vld [vmem:[%s273 + $0x40] sm:$0xf]
      %v308 = vld [vmem:[%s273 + $0x44] sm:$0xf]
      %v309 = vld [vmem:[%s273 + $0x48] sm:$0xf]
      %v310 = vld [vmem:[%s273 + $0x4c] sm:$0xf]
      %v311 = vld [vmem:[%s273 + $0x50] sm:$0xf]
      %v312 = vld [vmem:[%s273 + $0x54] sm:$0xf]
      %v313 = vld [vmem:[%s273 + $0x58] sm:$0xf]
      %v314 = vld [vmem:[%s273 + $0x5c] sm:$0xf]
      %v315 = vld [vmem:[%s273 + $0x60] sm:$0xf]
      %v316 = vld [vmem:[%s273 + $0x64] sm:$0xf]
      %v317 = vld [vmem:[%s273 + $0x68] sm:$0xf]
      %v318 = vld [vmem:[%s273 + $0x6c] sm:$0xf]
      %v319 = vld [vmem:[%s273 + $0x70] sm:$0xf]
      %v320 = vld [vmem:[%s273 + $0x74] sm:$0xf]
      %v321 = vld [vmem:[%s273 + $0x78] sm:$0xf]
      %v322 = vld [vmem:[%s1] sm:$0x3]
      %s323 = scalar_lea.vmem %s1, 6
      %v324 = vld [vmem:[%s323] sm:$0x3]
      %v349 = vunpack.c.l.b16 %v294
      %v350 = vunpack.c.l.b16 %v295
      %v351 = vunpack.c.l.b16 %v296
      %v352 = vunpack.c.l.b16 %v297
      %v353 = vunpack.c.l.b16 %v298
      %v354 = vunpack.c.l.b16 %v299
      %v355 = vunpack.c.l.b16 %v300
      %v356 = vunpack.c.l.b16 %v301
      %v357 = vunpack.c.l.b16 %v302
      %v358 = vunpack.c.l.b16 %v303
      %v359 = vunpack.c.l.b16 %v304
      %v360 = vunpack.c.l.b16 %v305
      %v361 = vunpack.c.l.b16 %v306
      %v362 = vunpack.c.l.b16 %v307
      %v363 = vunpack.c.l.b16 %v308
      %v364 = vunpack.c.l.b16 %v309
      %v365 = vunpack.c.l.b16 %v310
      %v366 = vunpack.c.l.b16 %v311
      %v367 = vunpack.c.l.b16 %v312
      %v368 = vunpack.c.l.b16 %v313
      %v369 = vunpack.c.l.b16 %v314
      %v370 = vunpack.c.l.b16 %v315
      %v371 = vunpack.c.l.b16 %v316
      %v372 = vunpack.c.l.b16 %v317
      %v373 = vpack.c.b16 %v350, %v349
      %v374 = vpack.c.b16 %v352, %v351
      %v375 = vpack.c.b16 %v354, %v353
      %v376 = vpack.c.b16 %v356, %v355
      %v377 = vpack.c.b16 %v358, %v357
      %v378 = vpack.c.b16 %v360, %v359
      %v379 = vpack.c.b16 %v362, %v361
      %v380 = vpack.c.b16 %v364, %v363
      %v381 = vpack.c.b16 %v366, %v365
      %v382 = vpack.c.b16 %v368, %v367
      %v383 = vpack.c.b16 %v370, %v369
      %v384 = vpack.c.b16 %v372, %v371
      %vm385 = vcmask 31744
      %v387 = vsel %vm385, %v373, 0
      %v390 = vsel %vm385, %v374, 0
      %v393 = vsel %vm385, %v375, 0
      %v396 = vsel %vm385, %v376, 0
      %v399 = vsel %vm385, %v377, 0
      %v402 = vsel %vm385, %v378, 0
      %v405 = vsel %vm385, %v379, 0
      %v408 = vsel %vm385, %v380, 0
      %v411 = vsel %vm385, %v381, 0
      %v414 = vsel %vm385, %v382, 0
      %v417 = vsel %vm385, %v383, 0
      %v420 = vsel %vm385, %v384, 0
      %vm422 = vcmask 1041408
      %v424 = vsel %vm422, %v324, 0
      %426 = vmatprep.subr.bf16.mxu0 0
      %427 = vmatpush1.bf16.msra.mxu0 0
      %428 = vmatprep.subr.bf16.mxu0 0
      %429 = vmatpush1.bf16.msra.mxu0 0
      %430 = vmatprep.subr.bf16.mxu0 0
      %431 = vmatpush1.bf16.msra.mxu0 0
      %432 = vmatprep.subr.bf16.mxu0 0
      %433 = vmatpush1.bf16.msra.mxu0 0
      %434 = vmatprep.subr.bf16.mxu0 0
      %435 = vmatpush1.bf16.msra.mxu0 0
      %436 = vmatprep.subr.bf16.mxu0 0
      %437 = vmatpush1.bf16.msra.mxu0 0
      %438 = vmatprep.subr.bf16.mxu0 0
      %439 = vmatpush1.bf16.msra.mxu0 0
      %440 = vmatprep.subr.bf16.mxu0 0
      %441 = vmatpush1.bf16.msra.mxu0 %v424
      %442 = vmatprep.subr.bf16.mxu0 0
      %443 = vmatpush2.bf16.msra.mxu0 0
      %444 = vmatprep.subr.bf16.mxu0 0
      %445 = vmatpush2.bf16.msra.mxu0 0
      %446 = vmatprep.subr.bf16.mxu0 0
      %447 = vmatpush2.bf16.msra.mxu0 0
      %448 = vmatprep.subr.bf16.mxu0 0
      %449 = vmatpush2.bf16.msra.mxu0 0
      %450 = vmatprep.subr.bf16.mxu0 0
      %451 = vmatpush2.bf16.msra.mxu0 0
      %452 = vmatprep.subr.bf16.mxu0 0
      %453 = vmatpush2.bf16.msra.mxu0 0
      %454 = vmatprep.subr.bf16.mxu0 0
      %455 = vmatpush2.bf16.msra.mxu0 0
      %456 = vmatprep.subr.bf16.mxu0 0
      %457 = vmatpush2.bf16.msra.mxu0 0
      %458 = vmatprep.mubr.bf16.mxu0 0
      %459 = vmatmul.mubr.bf16.gmra.mxu0 %v387
      %v460 = vpop.f32.mrf.mxu0
      %v461 = vadd.f32 0.0, %v460
      %v462 = vpop.f32.mrf.mxu0
      %v463 = vpop.f32.mrf.mxu0
      %v464 = vadd.f32 0.0, %v463
      %v465 = vpop.f32.mrf.mxu0
      %466 = vmatprep.mubr.bf16.mxu0 0
      %467 = vmatmul.mubr.bf16.gmra.mxu0 %v390
      %v468 = vpop.f32.mrf.mxu0
      %v469 = vadd.f32 0.0, %v468
      %v470 = vpop.f32.mrf.mxu0
      %v471 = vpop.f32.mrf.mxu0
      %v472 = vadd.f32 0.0, %v471
      %v473 = vpop.f32.mrf.mxu0
      %474 = vmatprep.mubr.bf16.mxu0 0
      %475 = vmatmul.mubr.bf16.gmra.mxu0 %v393
      %v476 = vpop.f32.mrf.mxu0
      %v477 = vadd.f32 0.0, %v476
      %v478 = vpop.f32.mrf.mxu0
      %v479 = vpop.f32.mrf.mxu0
      %v480 = vadd.f32 0.0, %v479
      %v481 = vpop.f32.mrf.mxu0
      %482 = vmatprep.mubr.bf16.mxu0 0
      %483 = vmatmul.mubr.bf16.gmra.mxu0 %v396
      %v484 = vpop.f32.mrf.mxu0
      %v485 = vadd.f32 0.0, %v484
      %v486 = vpop.f32.mrf.mxu0
      %v487 = vpop.f32.mrf.mxu0
      %v488 = vadd.f32 0.0, %v487
      %v489 = vpop.f32.mrf.mxu0
      %490 = vmatprep.mubr.bf16.mxu0 0
      %491 = vmatmul.mubr.bf16.gmra.mxu0 %v399
      %v492 = vpop.f32.mrf.mxu0
      %v493 = vadd.f32 0.0, %v492
      %v494 = vpop.f32.mrf.mxu0
      %v495 = vpop.f32.mrf.mxu0
      %v496 = vadd.f32 0.0, %v495
      %v497 = vpop.f32.mrf.mxu0
      %498 = vmatprep.mubr.bf16.mxu0 0
      %499 = vmatmul.mubr.bf16.gmra.mxu0 %v402
      %v500 = vpop.f32.mrf.mxu0
      %v501 = vadd.f32 0.0, %v500
      %v502 = vpop.f32.mrf.mxu0
      %v503 = vpop.f32.mrf.mxu0
      %v504 = vadd.f32 0.0, %v503
      %v505 = vpop.f32.mrf.mxu0
      %506 = vmatprep.mubr.bf16.mxu0 0
      %507 = vmatmul.mubr.bf16.gmra.mxu0 %v405
      %v508 = vpop.f32.mrf.mxu0
      %v509 = vadd.f32 0.0, %v508
      %v510 = vpop.f32.mrf.mxu0
      %v511 = vpop.f32.mrf.mxu0
      %v512 = vadd.f32 0.0, %v511
      %v513 = vpop.f32.mrf.mxu0
      %514 = vmatprep.mubr.bf16.mxu0 0
      %515 = vmatmul.mubr.bf16.gmra.mxu0 %v408
      %v516 = vpop.f32.mrf.mxu0
      %v517 = vadd.f32 0.0, %v516
      %v518 = vpop.f32.mrf.mxu0
      %v519 = vpop.f32.mrf.mxu0
      %v520 = vadd.f32 0.0, %v519
      %v521 = vpop.f32.mrf.mxu0
      %522 = vmatprep.mubr.bf16.mxu0 0
      %523 = vmatmul.mubr.bf16.gmra.mxu0 %v411
      %v524 = vpop.f32.mrf.mxu0
      %v525 = vadd.f32 0.0, %v524
      %v526 = vpop.f32.mrf.mxu0
      %v527 = vpop.f32.mrf.mxu0
      %v528 = vadd.f32 0.0, %v527
      %v529 = vpop.f32.mrf.mxu0
      %530 = vmatprep.mubr.bf16.mxu0 0
      %531 = vmatmul.mubr.bf16.gmra.mxu0 %v414
      %v532 = vpop.f32.mrf.mxu0
      %v533 = vadd.f32 0.0, %v532
      %v534 = vpop.f32.mrf.mxu0
      %v535 = vpop.f32.mrf.mxu0
      %v536 = vadd.f32 0.0, %v535
      %v537 = vpop.f32.mrf.mxu0
      %538 = vmatprep.mubr.bf16.mxu0 0
      %539 = vmatmul.mubr.bf16.gmra.mxu0 %v417
      %v540 = vpop.f32.mrf.mxu0
      %v541 = vadd.f32 0.0, %v540
      %v542 = vpop.f32.mrf.mxu0
      %v543 = vpop.f32.mrf.mxu0
      %v544 = vadd.f32 0.0, %v543
      %v545 = vpop.f32.mrf.mxu0
      %546 = vmatprep.mubr.bf16.mxu0 0
      %547 = vmatmul.mubr.bf16.gmra.mxu0 %v420
      %v548 = vpop.f32.mrf.mxu0
      %v549 = vadd.f32 0.0, %v548
      %v550 = vpop.f32.mrf.mxu0
      %v551 = vpop.f32.mrf.mxu0
      %v552 = vadd.f32 0.0, %v551
      %v553 = vpop.f32.mrf.mxu0
      %554 = vdwg.mxu0
      %v558 = vunpack.c.l.b16 %v291
      %v559 = vunpack.c.l.b16 %v292
      %v560 = vunpack.c.l.b16 %v293
      %v561 = vpack.c.b16 %v559, %v558
      %v562 = vpack.c.b16 %v349, %v560
      %v563 = vpack.c.b16 %v351, %v350
      %v564 = vpack.c.b16 %v353, %v352
      %v565 = vpack.c.b16 %v355, %v354
      %v566 = vpack.c.b16 %v357, %v356
      %v567 = vpack.c.b16 %v359, %v358
      %v568 = vpack.c.b16 %v361, %v360
      %v569 = vpack.c.b16 %v363, %v362
      %v570 = vpack.c.b16 %v365, %v364
      %v571 = vpack.c.b16 %v367, %v366
      %v572 = vpack.c.b16 %v369, %v368
      %v574 = vsel %vm385, %v561, 0
      %v577 = vsel %vm385, %v562, 0
      %v580 = vsel %vm385, %v563, 0
      %v583 = vsel %vm385, %v564, 0
      %v586 = vsel %vm385, %v565, 0
      %v589 = vsel %vm385, %v566, 0
      %v592 = vsel %vm385, %v567, 0
      %v595 = vsel %vm385, %v568, 0
      %v598 = vsel %vm385, %v569, 0
      %v601 = vsel %vm385, %v570, 0
      %v604 = vsel %vm385, %v571, 0
      %v607 = vsel %vm385, %v572, 0
      %v610 = vsel %vm422, %v322, 0
      %612 = vmatprep.subr.bf16.mxu0 0
      %613 = vmatpush1.bf16.msra.mxu0 0
      %614 = vmatprep.subr.bf16.mxu0 0
      %615 = vmatpush1.bf16.msra.mxu0 0
      %616 = vmatprep.subr.bf16.mxu0 0
      %617 = vmatpush1.bf16.msra.mxu0 0
      %618 = vmatprep.subr.bf16.mxu0 0
      %619 = vmatpush1.bf16.msra.mxu0 0
      %620 = vmatprep.subr.bf16.mxu0 0
      %621 = vmatpush1.bf16.msra.mxu0 0
      %622 = vmatprep.subr.bf16.mxu0 0
      %623 = vmatpush1.bf16.msra.mxu0 0
      %624 = vmatprep.subr.bf16.mxu0 0
      %625 = vmatpush1.bf16.msra.mxu0 0
      %626 = vmatprep.subr.bf16.mxu0 0
      %627 = vmatpush1.bf16.msra.mxu0 %v610
      %628 = vmatprep.subr.bf16.mxu0 0
      %629 = vmatpush2.bf16.msra.mxu0 0
      %630 = vmatprep.subr.bf16.mxu0 0
      %631 = vmatpush2.bf16.msra.mxu0 0
      %632 = vmatprep.subr.bf16.mxu0 0
      %633 = vmatpush2.bf16.msra.mxu0 0
      %634 = vmatprep.subr.bf16.mxu0 0
      %635 = vmatpush2.bf16.msra.mxu0 0
      %636 = vmatprep.subr.bf16.mxu0 0
      %637 = vmatpush2.bf16.msra.mxu0 0
      %638 = vmatprep.subr.bf16.mxu0 0
      %639 = vmatpush2.bf16.msra.mxu0 0
      %640 = vmatprep.subr.bf16.mxu0 0
      %641 = vmatpush2.bf16.msra.mxu0 0
      %642 = vmatprep.subr.bf16.mxu0 0
      %643 = vmatpush2.bf16.msra.mxu0 0
      %644 = vmatprep.mubr.bf16.mxu0 0
      %645 = vmatmul.mubr.bf16.gmra.mxu0 %v574
      %v646 = vpop.f32.mrf.mxu0
      %v647 = vadd.f32 %v461, %v646
      %v648 = vpop.f32.mrf.mxu0
      %v649 = vpop.f32.mrf.mxu0
      %v650 = vadd.f32 %v464, %v649
      %v651 = vpop.f32.mrf.mxu0
      %652 = vmatprep.mubr.bf16.mxu0 0
      %653 = vmatmul.mubr.bf16.gmra.mxu0 %v577
      %v654 = vpop.f32.mrf.mxu0
      %v655 = vadd.f32 %v469, %v654
      %v656 = vpop.f32.mrf.mxu0
      %v657 = vpop.f32.mrf.mxu0
      %v658 = vadd.f32 %v472, %v657
      %v659 = vpop.f32.mrf.mxu0
      %660 = vmatprep.mubr.bf16.mxu0 0
      %661 = vmatmul.mubr.bf16.gmra.mxu0 %v580
      %v662 = vpop.f32.mrf.mxu0
      %v663 = vadd.f32 %v477, %v662
      %v664 = vpop.f32.mrf.mxu0
      %v665 = vpop.f32.mrf.mxu0
      %v666 = vadd.f32 %v480, %v665
      %v667 = vpop.f32.mrf.mxu0
      %668 = vmatprep.mubr.bf16.mxu0 0
      %669 = vmatmul.mubr.bf16.gmra.mxu0 %v583
      %v670 = vpop.f32.mrf.mxu0
      %v671 = vadd.f32 %v485, %v670
      %v672 = vpop.f32.mrf.mxu0
      %v673 = vpop.f32.mrf.mxu0
      %v674 = vadd.f32 %v488, %v673
      %v675 = vpop.f32.mrf.mxu0
      %676 = vmatprep.mubr.bf16.mxu0 0
      %677 = vmatmul.mubr.bf16.gmra.mxu0 %v586
      %v678 = vpop.f32.mrf.mxu0
      %v679 = vadd.f32 %v493, %v678
      %v680 = vpop.f32.mrf.mxu0
      %v681 = vpop.f32.mrf.mxu0
      %v682 = vadd.f32 %v496, %v681
      %v683 = vpop.f32.mrf.mxu0
      %684 = vmatprep.mubr.bf16.mxu0 0
      %685 = vmatmul.mubr.bf16.gmra.mxu0 %v589
      %v686 = vpop.f32.mrf.mxu0
      %v687 = vadd.f32 %v501, %v686
      %v688 = vpop.f32.mrf.mxu0
      %v689 = vpop.f32.mrf.mxu0
      %v690 = vadd.f32 %v504, %v689
      %v691 = vpop.f32.mrf.mxu0
      %692 = vmatprep.mubr.bf16.mxu0 0
      %693 = vmatmul.mubr.bf16.gmra.mxu0 %v592
      %v694 = vpop.f32.mrf.mxu0
      %v695 = vadd.f32 %v509, %v694
      %v696 = vpop.f32.mrf.mxu0
      %v697 = vpop.f32.mrf.mxu0
      %v698 = vadd.f32 %v512, %v697
      %v699 = vpop.f32.mrf.mxu0
      %700 = vmatprep.mubr.bf16.mxu0 0
      %701 = vmatmul.mubr.bf16.gmra.mxu0 %v595
      %v702 = vpop.f32.mrf.mxu0
      %v703 = vadd.f32 %v517, %v702
      %v704 = vpop.f32.mrf.mxu0
      %v705 = vpop.f32.mrf.mxu0
      %v706 = vadd.f32 %v520, %v705
      %v707 = vpop.f32.mrf.mxu0
      %708 = vmatprep.mubr.bf16.mxu0 0
      %709 = vmatmul.mubr.bf16.gmra.mxu0 %v598
      %v710 = vpop.f32.mrf.mxu0
      %v711 = vadd.f32 %v525, %v710
      %v712 = vpop.f32.mrf.mxu0
      %v713 = vpop.f32.mrf.mxu0
      %v714 = vadd.f32 %v528, %v713
      %v715 = vpop.f32.mrf.mxu0
      %716 = vmatprep.mubr.bf16.mxu0 0
      %717 = vmatmul.mubr.bf16.gmra.mxu0 %v601
      %v718 = vpop.f32.mrf.mxu0
      %v719 = vadd.f32 %v533, %v718
      %v720 = vpop.f32.mrf.mxu0
      %v721 = vpop.f32.mrf.mxu0
      %v722 = vadd.f32 %v536, %v721
      %v723 = vpop.f32.mrf.mxu0
      %724 = vmatprep.mubr.bf16.mxu0 0
      %725 = vmatmul.mubr.bf16.gmra.mxu0 %v604
      %v726 = vpop.f32.mrf.mxu0
      %v727 = vadd.f32 %v541, %v726
      %v728 = vpop.f32.mrf.mxu0
      %v729 = vpop.f32.mrf.mxu0
      %v730 = vadd.f32 %v544, %v729
      %v731 = vpop.f32.mrf.mxu0
      %732 = vmatprep.mubr.bf16.mxu0 0
      %733 = vmatmul.mubr.bf16.gmra.mxu0 %v607
      %v734 = vpop.f32.mrf.mxu0
      %v735 = vadd.f32 %v549, %v734
      %v736 = vpop.f32.mrf.mxu0
      %v737 = vpop.f32.mrf.mxu0
      %v738 = vadd.f32 %v552, %v737
      %v739 = vpop.f32.mrf.mxu0
      %740 = vdwg.mxu0
      %s741 = scalar_lea.vmem %s1, 12
      %v742 = vld [vmem:[%s741] sm:$0x3]
      %v746 = vunpack.c.l.b16 %v318
      %v747 = vunpack.c.l.b16 %v319
      %v748 = vunpack.c.l.b16 %v320
      %v749 = vpack.c.b16 %v371, %v370
      %v750 = vpack.c.b16 %v746, %v372
      %v751 = vpack.c.b16 %v748, %v747
      %v753 = vsel %vm385, %v749, 0
      %v756 = vsel %vm385, %v750, 0
      %v759 = vsel %vm385, %v751, 0
      %v762 = vsel %vm422, %v742, 0
      %764 = vmatprep.subr.bf16.mxu0 0
      %765 = vmatpush1.bf16.msra.mxu0 0
      %766 = vmatprep.subr.bf16.mxu0 0
      %767 = vmatpush1.bf16.msra.mxu0 0
      %768 = vmatprep.subr.bf16.mxu0 0
      %769 = vmatpush1.bf16.msra.mxu0 0
      %770 = vmatprep.subr.bf16.mxu0 0
      %771 = vmatpush1.bf16.msra.mxu0 0
      %772 = vmatprep.subr.bf16.mxu0 0
      %773 = vmatpush1.bf16.msra.mxu0 0
      %774 = vmatprep.subr.bf16.mxu0 0
      %775 = vmatpush1.bf16.msra.mxu0 0
      %776 = vmatprep.subr.bf16.mxu0 0
      %777 = vmatpush1.bf16.msra.mxu0 0
      %778 = vmatprep.subr.bf16.mxu0 0
      %779 = vmatpush1.bf16.msra.mxu0 %v762
      %780 = vmatprep.subr.bf16.mxu0 0
      %781 = vmatpush2.bf16.msra.mxu0 0
      %782 = vmatprep.subr.bf16.mxu0 0
      %783 = vmatpush2.bf16.msra.mxu0 0
      %784 = vmatprep.subr.bf16.mxu0 0
      %785 = vmatpush2.bf16.msra.mxu0 0
      %786 = vmatprep.subr.bf16.mxu0 0
      %787 = vmatpush2.bf16.msra.mxu0 0
      %788 = vmatprep.subr.bf16.mxu0 0
      %789 = vmatpush2.bf16.msra.mxu0 0
      %790 = vmatprep.subr.bf16.mxu0 0
      %791 = vmatpush2.bf16.msra.mxu0 0
      %792 = vmatprep.subr.bf16.mxu0 0
      %793 = vmatpush2.bf16.msra.mxu0 0
      %794 = vmatprep.subr.bf16.mxu0 0
      %795 = vmatpush2.bf16.msra.mxu0 0
      %796 = vmatprep.mubr.bf16.mxu0 0
      %797 = vmatmul.mubr.bf16.gmra.mxu0 %v583
      %v798 = vpop.f32.mrf.mxu0
      %v799 = vadd.f32 0.0, %v798
      %v800 = vpop.f32.mrf.mxu0
      %v801 = vpop.f32.mrf.mxu0
      %v802 = vadd.f32 0.0, %v801
      %v803 = vpop.f32.mrf.mxu0
      %804 = vmatprep.mubr.bf16.mxu0 0
      %805 = vmatmul.mubr.bf16.gmra.mxu0 %v586
      %v806 = vpop.f32.mrf.mxu0
      %v807 = vadd.f32 0.0, %v806
      %v808 = vpop.f32.mrf.mxu0
      %v809 = vpop.f32.mrf.mxu0
      %v810 = vadd.f32 0.0, %v809
      %v811 = vpop.f32.mrf.mxu0
      %812 = vmatprep.mubr.bf16.mxu0 0
      %813 = vmatmul.mubr.bf16.gmra.mxu0 %v589
      %v814 = vpop.f32.mrf.mxu0
      %v815 = vadd.f32 0.0, %v814
      %v816 = vpop.f32.mrf.mxu0
      %v817 = vpop.f32.mrf.mxu0
      %v818 = vadd.f32 0.0, %v817
      %v819 = vpop.f32.mrf.mxu0
      %820 = vmatprep.mubr.bf16.mxu0 0
      %821 = vmatmul.mubr.bf16.gmra.mxu0 %v592
      %v822 = vpop.f32.mrf.mxu0
      %v823 = vadd.f32 0.0, %v822
      %v824 = vpop.f32.mrf.mxu0
      %v825 = vpop.f32.mrf.mxu0
      %v826 = vadd.f32 0.0, %v825
      %v827 = vpop.f32.mrf.mxu0
      %828 = vmatprep.mubr.bf16.mxu0 0
      %829 = vmatmul.mubr.bf16.gmra.mxu0 %v595
      %v830 = vpop.f32.mrf.mxu0
      %v831 = vadd.f32 0.0, %v830
      %v832 = vpop.f32.mrf.mxu0
      %v833 = vpop.f32.mrf.mxu0
      %v834 = vadd.f32 0.0, %v833
      %v835 = vpop.f32.mrf.mxu0
      %836 = vmatprep.mubr.bf16.mxu0 0
      %837 = vmatmul.mubr.bf16.gmra.mxu0 %v598
      %v838 = vpop.f32.mrf.mxu0
      %v839 = vadd.f32 0.0, %v838
      %v840 = vpop.f32.mrf.mxu0
      %v841 = vpop.f32.mrf.mxu0
      %v842 = vadd.f32 0.0, %v841
      %v843 = vpop.f32.mrf.mxu0
      %844 = vmatprep.mubr.bf16.mxu0 0
      %845 = vmatmul.mubr.bf16.gmra.mxu0 %v601
      %v846 = vpop.f32.mrf.mxu0
      %v847 = vadd.f32 0.0, %v846
      %v848 = vpop.f32.mrf.mxu0
      %v849 = vpop.f32.mrf.mxu0
      %v850 = vadd.f32 0.0, %v849
      %v851 = vpop.f32.mrf.mxu0
      %852 = vmatprep.mubr.bf16.mxu0 0
      %853 = vmatmul.mubr.bf16.gmra.mxu0 %v604
      %v854 = vpop.f32.mrf.mxu0
      %v855 = vadd.f32 0.0, %v854
      %v856 = vpop.f32.mrf.mxu0
      %v857 = vpop.f32.mrf.mxu0
      %v858 = vadd.f32 0.0, %v857
      %v859 = vpop.f32.mrf.mxu0
      %860 = vmatprep.mubr.bf16.mxu0 0
      %861 = vmatmul.mubr.bf16.gmra.mxu0 %v607
      %v862 = vpop.f32.mrf.mxu0
      %v863 = vadd.f32 0.0, %v862
      %v864 = vpop.f32.mrf.mxu0
      %v865 = vpop.f32.mrf.mxu0
      %v866 = vadd.f32 0.0, %v865
      %v867 = vpop.f32.mrf.mxu0
      %868 = vmatprep.mubr.bf16.mxu0 0
      %869 = vmatmul.mubr.bf16.gmra.mxu0 %v753
      %v870 = vpop.f32.mrf.mxu0
      %v871 = vadd.f32 0.0, %v870
      %v872 = vpop.f32.mrf.mxu0
      %v873 = vpop.f32.mrf.mxu0
      %v874 = vadd.f32 0.0, %v873
      %v875 = vpop.f32.mrf.mxu0
      %876 = vmatprep.mubr.bf16.mxu0 0
      %877 = vmatmul.mubr.bf16.gmra.mxu0 %v756
      %v878 = vpop.f32.mrf.mxu0
      %v879 = vadd.f32 0.0, %v878
      %v880 = vpop.f32.mrf.mxu0
      %v881 = vpop.f32.mrf.mxu0
      %v882 = vadd.f32 0.0, %v881
      %v883 = vpop.f32.mrf.mxu0
      %884 = vmatprep.mubr.bf16.mxu0 0
      %885 = vmatmul.mubr.bf16.gmra.mxu0 %v759
      %v886 = vpop.f32.mrf.mxu0
      %v887 = vadd.f32 0.0, %v886
      %v888 = vpop.f32.mrf.mxu0
      %v889 = vpop.f32.mrf.mxu0
      %v890 = vadd.f32 0.0, %v889
      %v891 = vpop.f32.mrf.mxu0
      %892 = vdwg.mxu0
      %v893 = vadd.f32 %v647, %v799
      %v894 = vadd.f32 %v650, %v802
      %v895 = vadd.f32 %v655, %v807
      %v896 = vadd.f32 %v658, %v810
      %v897 = vadd.f32 %v663, %v815
      %v898 = vadd.f32 %v666, %v818
      %v899 = vadd.f32 %v671, %v823
      %v900 = vadd.f32 %v674, %v826
      %v901 = vadd.f32 %v679, %v831
      %v902 = vadd.f32 %v682, %v834
      %v903 = vadd.f32 %v687, %v839
      %v904 = vadd.f32 %v690, %v842
      %v905 = vadd.f32 %v695, %v847
      %v906 = vadd.f32 %v698, %v850
      %v907 = vadd.f32 %v703, %v855
      %v908 = vadd.f32 %v706, %v858
      %v909 = vadd.f32 %v711, %v863
      %v910 = vadd.f32 %v714, %v866
      %v911 = vadd.f32 %v719, %v871
      %v912 = vadd.f32 %v722, %v874
      %v913 = vadd.f32 %v727, %v879
      %v914 = vadd.f32 %v730, %v882
      %v915 = vadd.f32 %v735, %v887
      %v916 = vadd.f32 %v738, %v890
      %v917 = vld [vmem:[%s2] sm:$0x1]
      %v919 = vlaneseq
      %v920 = vshrl.u32 %v919, 7
      %v921 = vsub.s32 0, %v920
      %v922 = vrot.slane %v917, %v921
      %v924 = vadd.f32 %v893, %v922
      %v925 = vadd.f32 %v894, %v922
      %v926 = vadd.f32 %v895, %v922
      %v927 = vadd.f32 %v896, %v922
      %v928 = vadd.f32 %v897, %v922
      %v929 = vadd.f32 %v898, %v922
      %v930 = vadd.f32 %v899, %v922
      %v931 = vadd.f32 %v900, %v922
      %v932 = vadd.f32 %v901, %v922
      %v933 = vadd.f32 %v902, %v922
      %v934 = vadd.f32 %v903, %v922
      %v935 = vadd.f32 %v904, %v922
      %v936 = vadd.f32 %v905, %v922
      %v937 = vadd.f32 %v906, %v922
      %v938 = vadd.f32 %v907, %v922
      %v939 = vadd.f32 %v908, %v922
      %v940 = vadd.f32 %v909, %v922
      %v941 = vadd.f32 %v910, %v922
      %v942 = vadd.f32 %v911, %v922
      %v943 = vadd.f32 %v912, %v922
      %v944 = vadd.f32 %v913, %v922
      %v945 = vadd.f32 %v914, %v922
      %v946 = vadd.f32 %v915, %v922
      %v947 = vadd.f32 %v916, %v922
      %s948 = scalar_lea.vmem %s1, 2
      %v949 = vld [vmem:[%s948] sm:$0x3]
      %s950 = scalar_lea.vmem %s1, 8
      %v951 = vld [vmem:[%s950] sm:$0x3]
      %v952 = vpack.c.b16 %v746, %v746
      %v954 = vsel %vm385, %v952, 0
      %v957 = vsel %vm422, %v951, 0
      %959 = vmatprep.subr.bf16.mxu0 0
      %960 = vmatpush1.bf16.msra.mxu0 0
      %961 = vmatprep.subr.bf16.mxu0 0
      %962 = vmatpush1.bf16.msra.mxu0 0
      %963 = vmatprep.subr.bf16.mxu0 0
      %964 = vmatpush1.bf16.msra.mxu0 0
      %965 = vmatprep.subr.bf16.mxu0 0
      %966 = vmatpush1.bf16.msra.mxu0 0
      %967 = vmatprep.subr.bf16.mxu0 0
      %968 = vmatpush1.bf16.msra.mxu0 0
      %969 = vmatprep.subr.bf16.mxu0 0
      %970 = vmatpush1.bf16.msra.mxu0 0
      %971 = vmatprep.subr.bf16.mxu0 0
      %972 = vmatpush1.bf16.msra.mxu0 0
      %973 = vmatprep.subr.bf16.mxu0 0
      %974 = vmatpush1.bf16.msra.mxu0 %v957
      %975 = vmatprep.subr.bf16.mxu0 0
      %976 = vmatpush2.bf16.msra.mxu0 0
      %977 = vmatprep.subr.bf16.mxu0 0
      %978 = vmatpush2.bf16.msra.mxu0 0
      %979 = vmatprep.subr.bf16.mxu0 0
      %980 = vmatpush2.bf16.msra.mxu0 0
      %981 = vmatprep.subr.bf16.mxu0 0
      %982 = vmatpush2.bf16.msra.mxu0 0
      %983 = vmatprep.subr.bf16.mxu0 0
      %984 = vmatpush2.bf16.msra.mxu0 0
      %985 = vmatprep.subr.bf16.mxu0 0
      %986 = vmatpush2.bf16.msra.mxu0 0
      %987 = vmatprep.subr.bf16.mxu0 0
      %988 = vmatpush2.bf16.msra.mxu0 0
      %989 = vmatprep.subr.bf16.mxu0 0
      %990 = vmatpush2.bf16.msra.mxu0 0
      %991 = vmatprep.mubr.bf16.mxu0 0
      %992 = vmatmul.mubr.bf16.gmra.mxu0 %v387
      %v993 = vpop.f32.mrf.mxu0
      %v994 = vadd.f32 0.0, %v993
      %v995 = vpop.f32.mrf.mxu0
      %v996 = vpop.f32.mrf.mxu0
      %v997 = vadd.f32 0.0, %v996
      %v998 = vpop.f32.mrf.mxu0
      %999 = vmatprep.mubr.bf16.mxu0 0
      %1000 = vmatmul.mubr.bf16.gmra.mxu0 %v390
      %v1001 = vpop.f32.mrf.mxu0
      %v1002 = vadd.f32 0.0, %v1001
      %v1003 = vpop.f32.mrf.mxu0
      %v1004 = vpop.f32.mrf.mxu0
      %v1005 = vadd.f32 0.0, %v1004
      %v1006 = vpop.f32.mrf.mxu0
      %1007 = vmatprep.mubr.bf16.mxu0 0
      %1008 = vmatmul.mubr.bf16.gmra.mxu0 %v393
      %v1009 = vpop.f32.mrf.mxu0
      %v1010 = vadd.f32 0.0, %v1009
      %v1011 = vpop.f32.mrf.mxu0
      %v1012 = vpop.f32.mrf.mxu0
      %v1013 = vadd.f32 0.0, %v1012
      %v1014 = vpop.f32.mrf.mxu0
      %1015 = vmatprep.mubr.bf16.mxu0 0
      %1016 = vmatmul.mubr.bf16.gmra.mxu0 %v396
      %v1017 = vpop.f32.mrf.mxu0
      %v1018 = vadd.f32 0.0, %v1017
      %v1019 = vpop.f32.mrf.mxu0
      %v1020 = vpop.f32.mrf.mxu0
      %v1021 = vadd.f32 0.0, %v1020
      %v1022 = vpop.f32.mrf.mxu0
      %1023 = vmatprep.mubr.bf16.mxu0 0
      %1024 = vmatmul.mubr.bf16.gmra.mxu0 %v399
      %v1025 = vpop.f32.mrf.mxu0
      %v1026 = vadd.f32 0.0, %v1025
      %v1027 = vpop.f32.mrf.mxu0
      %v1028 = vpop.f32.mrf.mxu0
      %v1029 = vadd.f32 0.0, %v1028
      %v1030 = vpop.f32.mrf.mxu0
      %1031 = vmatprep.mubr.bf16.mxu0 0
      %1032 = vmatmul.mubr.bf16.gmra.mxu0 %v402
      %v1033 = vpop.f32.mrf.mxu0
      %v1034 = vadd.f32 0.0, %v1033
      %v1035 = vpop.f32.mrf.mxu0
      %v1036 = vpop.f32.mrf.mxu0
      %v1037 = vadd.f32 0.0, %v1036
      %v1038 = vpop.f32.mrf.mxu0
      %1039 = vmatprep.mubr.bf16.mxu0 0
      %1040 = vmatmul.mubr.bf16.gmra.mxu0 %v405
      %v1041 = vpop.f32.mrf.mxu0
      %v1042 = vadd.f32 0.0, %v1041
      %v1043 = vpop.f32.mrf.mxu0
      %v1044 = vpop.f32.mrf.mxu0
      %v1045 = vadd.f32 0.0, %v1044
      %v1046 = vpop.f32.mrf.mxu0
      %1047 = vmatprep.mubr.bf16.mxu0 0
      %1048 = vmatmul.mubr.bf16.gmra.mxu0 %v408
      %v1049 = vpop.f32.mrf.mxu0
      %v1050 = vadd.f32 0.0, %v1049
      %v1051 = vpop.f32.mrf.mxu0
      %v1052 = vpop.f32.mrf.mxu0
      %v1053 = vadd.f32 0.0, %v1052
      %v1054 = vpop.f32.mrf.mxu0
      %1055 = vmatprep.mubr.bf16.mxu0 0
      %1056 = vmatmul.mubr.bf16.gmra.mxu0 %v411
      %v1057 = vpop.f32.mrf.mxu0
      %v1058 = vadd.f32 0.0, %v1057
      %v1059 = vpop.f32.mrf.mxu0
      %v1060 = vpop.f32.mrf.mxu0
      %v1061 = vadd.f32 0.0, %v1060
      %v1062 = vpop.f32.mrf.mxu0
      %1063 = vmatprep.mubr.bf16.mxu0 0
      %1064 = vmatmul.mubr.bf16.gmra.mxu0 %v414
      %v1065 = vpop.f32.mrf.mxu0
      %v1066 = vadd.f32 0.0, %v1065
      %v1067 = vpop.f32.mrf.mxu0
      %v1068 = vpop.f32.mrf.mxu0
      %v1069 = vadd.f32 0.0, %v1068
      %v1070 = vpop.f32.mrf.mxu0
      %1071 = vmatprep.mubr.bf16.mxu0 0
      %1072 = vmatmul.mubr.bf16.gmra.mxu0 %v417
      %v1073 = vpop.f32.mrf.mxu0
      %v1074 = vadd.f32 0.0, %v1073
      %v1075 = vpop.f32.mrf.mxu0
      %v1076 = vpop.f32.mrf.mxu0
      %v1077 = vadd.f32 0.0, %v1076
      %v1078 = vpop.f32.mrf.mxu0
      %1079 = vmatprep.mubr.bf16.mxu0 0
      %1080 = vmatmul.mubr.bf16.gmra.mxu0 %v420
      %v1081 = vpop.f32.mrf.mxu0
      %v1082 = vadd.f32 0.0, %v1081
      %v1083 = vpop.f32.mrf.mxu0
      %v1084 = vpop.f32.mrf.mxu0
      %v1085 = vadd.f32 0.0, %v1084
      %v1086 = vpop.f32.mrf.mxu0
      %1087 = vmatprep.mubr.bf16.mxu0 0
      %1088 = vmatmul.mubr.bf16.gmra.mxu0 %v954
      %v1089 = vpop.f32.mrf.mxu0
      %v1090 = vadd.f32 0.0, %v1089
      %v1091 = vpop.f32.mrf.mxu0
      %v1092 = vpop.f32.mrf.mxu0
      %v1093 = vpop.f32.mrf.mxu0
      %1094 = vdwg.mxu0
      %v1095 = vpack.c.b16 %v370, %v370
      %v1097 = vsel %vm385, %v1095, 0
      %v1100 = vsel %vm422, %v949, 0
      %1102 = vmatprep.subr.bf16.mxu0 0
      %1103 = vmatpush1.bf16.msra.mxu0 0
      %1104 = vmatprep.subr.bf16.mxu0 0
      %1105 = vmatpush1.bf16.msra.mxu0 0
      %1106 = vmatprep.subr.bf16.mxu0 0
      %1107 = vmatpush1.bf16.msra.mxu0 0
      %1108 = vmatprep.subr.bf16.mxu0 0
      %1109 = vmatpush1.bf16.msra.mxu0 0
      %1110 = vmatprep.subr.bf16.mxu0 0
      %1111 = vmatpush1.bf16.msra.mxu0 0
      %1112 = vmatprep.subr.bf16.mxu0 0
      %1113 = vmatpush1.bf16.msra.mxu0 0
      %1114 = vmatprep.subr.bf16.mxu0 0
      %1115 = vmatpush1.bf16.msra.mxu0 0
      %1116 = vmatprep.subr.bf16.mxu0 0
      %1117 = vmatpush1.bf16.msra.mxu0 %v1100
      %1118 = vmatprep.subr.bf16.mxu0 0
      %1119 = vmatpush2.bf16.msra.mxu0 0
      %1120 = vmatprep.subr.bf16.mxu0 0
      %1121 = vmatpush2.bf16.msra.mxu0 0
      %1122 = vmatprep.subr.bf16.mxu0 0
      %1123 = vmatpush2.bf16.msra.mxu0 0
      %1124 = vmatprep.subr.bf16.mxu0 0
      %1125 = vmatpush2.bf16.msra.mxu0 0
      %1126 = vmatprep.subr.bf16.mxu0 0
      %1127 = vmatpush2.bf16.msra.mxu0 0
      %1128 = vmatprep.subr.bf16.mxu0 0
      %1129 = vmatpush2.bf16.msra.mxu0 0
      %1130 = vmatprep.subr.bf16.mxu0 0
      %1131 = vmatpush2.bf16.msra.mxu0 0
      %1132 = vmatprep.subr.bf16.mxu0 0
      %1133 = vmatpush2.bf16.msra.mxu0 0
      %1134 = vmatprep.mubr.bf16.mxu0 0
      %1135 = vmatmul.mubr.bf16.gmra.mxu0 %v574
      %v1136 = vpop.f32.mrf.mxu0
      %v1137 = vadd.f32 %v994, %v1136
      %v1138 = vpop.f32.mrf.mxu0
      %v1139 = vpop.f32.mrf.mxu0
      %v1140 = vadd.f32 %v997, %v1139
      %v1141 = vpop.f32.mrf.mxu0
      %1142 = vmatprep.mubr.bf16.mxu0 0
      %1143 = vmatmul.mubr.bf16.gmra.mxu0 %v577
      %v1144 = vpop.f32.mrf.mxu0
      %v1145 = vadd.f32 %v1002, %v1144
      %v1146 = vpop.f32.mrf.mxu0
      %v1147 = vpop.f32.mrf.mxu0
      %v1148 = vadd.f32 %v1005, %v1147
      %v1149 = vpop.f32.mrf.mxu0
      %1150 = vmatprep.mubr.bf16.mxu0 0
      %1151 = vmatmul.mubr.bf16.gmra.mxu0 %v580
      %v1152 = vpop.f32.mrf.mxu0
      %v1153 = vadd.f32 %v1010, %v1152
      %v1154 = vpop.f32.mrf.mxu0
      %v1155 = vpop.f32.mrf.mxu0
      %v1156 = vadd.f32 %v1013, %v1155
      %v1157 = vpop.f32.mrf.mxu0
      %1158 = vmatprep.mubr.bf16.mxu0 0
      %1159 = vmatmul.mubr.bf16.gmra.mxu0 %v583
      %v1160 = vpop.f32.mrf.mxu0
      %v1161 = vadd.f32 %v1018, %v1160
      %v1162 = vpop.f32.mrf.mxu0
      %v1163 = vpop.f32.mrf.mxu0
      %v1164 = vadd.f32 %v1021, %v1163
      %v1165 = vpop.f32.mrf.mxu0
      %1166 = vmatprep.mubr.bf16.mxu0 0
      %1167 = vmatmul.mubr.bf16.gmra.mxu0 %v586
      %v1168 = vpop.f32.mrf.mxu0
      %v1169 = vadd.f32 %v1026, %v1168
      %v1170 = vpop.f32.mrf.mxu0
      %v1171 = vpop.f32.mrf.mxu0
      %v1172 = vadd.f32 %v1029, %v1171
      %v1173 = vpop.f32.mrf.mxu0
      %1174 = vmatprep.mubr.bf16.mxu0 0
      %1175 = vmatmul.mubr.bf16.gmra.mxu0 %v589
      %v1176 = vpop.f32.mrf.mxu0
      %v1177 = vadd.f32 %v1034, %v1176
      %v1178 = vpop.f32.mrf.mxu0
      %v1179 = vpop.f32.mrf.mxu0
      %v1180 = vadd.f32 %v1037, %v1179
      %v1181 = vpop.f32.mrf.mxu0
      %1182 = vmatprep.mubr.bf16.mxu0 0
      %1183 = vmatmul.mubr.bf16.gmra.mxu0 %v592
      %v1184 = vpop.f32.mrf.mxu0
      %v1185 = vadd.f32 %v1042, %v1184
      %v1186 = vpop.f32.mrf.mxu0
      %v1187 = vpop.f32.mrf.mxu0
      %v1188 = vadd.f32 %v1045, %v1187
      %v1189 = vpop.f32.mrf.mxu0
      %1190 = vmatprep.mubr.bf16.mxu0 0
      %1191 = vmatmul.mubr.bf16.gmra.mxu0 %v595
      %v1192 = vpop.f32.mrf.mxu0
      %v1193 = vadd.f32 %v1050, %v1192
      %v1194 = vpop.f32.mrf.mxu0
      %v1195 = vpop.f32.mrf.mxu0
      %v1196 = vadd.f32 %v1053, %v1195
      %v1197 = vpop.f32.mrf.mxu0
      %1198 = vmatprep.mubr.bf16.mxu0 0
      %1199 = vmatmul.mubr.bf16.gmra.mxu0 %v598
      %v1200 = vpop.f32.mrf.mxu0
      %v1201 = vadd.f32 %v1058, %v1200
      %v1202 = vpop.f32.mrf.mxu0
      %v1203 = vpop.f32.mrf.mxu0
      %v1204 = vadd.f32 %v1061, %v1203
      %v1205 = vpop.f32.mrf.mxu0
      %1206 = vmatprep.mubr.bf16.mxu0 0
      %1207 = vmatmul.mubr.bf16.gmra.mxu0 %v601
      %v1208 = vpop.f32.mrf.mxu0
      %v1209 = vadd.f32 %v1066, %v1208
      %v1210 = vpop.f32.mrf.mxu0
      %v1211 = vpop.f32.mrf.mxu0
      %v1212 = vadd.f32 %v1069, %v1211
      %v1213 = vpop.f32.mrf.mxu0
      %1214 = vmatprep.mubr.bf16.mxu0 0
      %1215 = vmatmul.mubr.bf16.gmra.mxu0 %v604
      %v1216 = vpop.f32.mrf.mxu0
      %v1217 = vadd.f32 %v1074, %v1216
      %v1218 = vpop.f32.mrf.mxu0
      %v1219 = vpop.f32.mrf.mxu0
      %v1220 = vadd.f32 %v1077, %v1219
      %v1221 = vpop.f32.mrf.mxu0
      %1222 = vmatprep.mubr.bf16.mxu0 0
      %1223 = vmatmul.mubr.bf16.gmra.mxu0 %v607
      %v1224 = vpop.f32.mrf.mxu0
      %v1225 = vadd.f32 %v1082, %v1224
      %v1226 = vpop.f32.mrf.mxu0
      %v1227 = vpop.f32.mrf.mxu0
      %v1228 = vadd.f32 %v1085, %v1227
      %v1229 = vpop.f32.mrf.mxu0
      %1230 = vmatprep.mubr.bf16.mxu0 0
      %1231 = vmatmul.mubr.bf16.gmra.mxu0 %v1097
      %v1232 = vpop.f32.mrf.mxu0
      %v1233 = vadd.f32 %v1090, %v1232
      %v1234 = vpop.f32.mrf.mxu0
      %v1235 = vpop.f32.mrf.mxu0
      %v1236 = vpop.f32.mrf.mxu0
      %1237 = vdwg.mxu0
      %s1238 = scalar_lea.vmem %s1, 14
      %v1239 = vld [vmem:[%s1238] sm:$0x3]
      %v1241 = vunpack.c.l.b16 %v321
      %v1242 = vpack.c.b16 %v1241, %v1241
      %v1244 = vsel %vm385, %v1242, 0
      %v1247 = vsel %vm422, %v1239, 0
      %1249 = vmatprep.subr.bf16.mxu0 0
      %1250 = vmatpush1.bf16.msra.mxu0 0
      %1251 = vmatprep.subr.bf16.mxu0 0
      %1252 = vmatpush1.bf16.msra.mxu0 0
      %1253 = vmatprep.subr.bf16.mxu0 0
      %1254 = vmatpush1.bf16.msra.mxu0 0
      %1255 = vmatprep.subr.bf16.mxu0 0
      %1256 = vmatpush1.bf16.msra.mxu0 0
      %1257 = vmatprep.subr.bf16.mxu0 0
      %1258 = vmatpush1.bf16.msra.mxu0 0
      %1259 = vmatprep.subr.bf16.mxu0 0
      %1260 = vmatpush1.bf16.msra.mxu0 0
      %1261 = vmatprep.subr.bf16.mxu0 0
      %1262 = vmatpush1.bf16.msra.mxu0 0
      %1263 = vmatprep.subr.bf16.mxu0 0
      %1264 = vmatpush1.bf16.msra.mxu0 %v1247
      %1265 = vmatprep.subr.bf16.mxu0 0
      %1266 = vmatpush2.bf16.msra.mxu0 0
      %1267 = vmatprep.subr.bf16.mxu0 0
      %1268 = vmatpush2.bf16.msra.mxu0 0
      %1269 = vmatprep.subr.bf16.mxu0 0
      %1270 = vmatpush2.bf16.msra.mxu0 0
      %1271 = vmatprep.subr.bf16.mxu0 0
      %1272 = vmatpush2.bf16.msra.mxu0 0
      %1273 = vmatprep.subr.bf16.mxu0 0
      %1274 = vmatpush2.bf16.msra.mxu0 0
      %1275 = vmatprep.subr.bf16.mxu0 0
      %1276 = vmatpush2.bf16.msra.mxu0 0
      %1277 = vmatprep.subr.bf16.mxu0 0
      %1278 = vmatpush2.bf16.msra.mxu0 0
      %1279 = vmatprep.subr.bf16.mxu0 0
      %1280 = vmatpush2.bf16.msra.mxu0 0
      %1281 = vmatprep.mubr.bf16.mxu0 0
      %1282 = vmatmul.mubr.bf16.gmra.mxu0 %v583
      %v1283 = vpop.f32.mrf.mxu0
      %v1284 = vadd.f32 0.0, %v1283
      %v1285 = vpop.f32.mrf.mxu0
      %v1286 = vpop.f32.mrf.mxu0
      %v1287 = vadd.f32 0.0, %v1286
      %v1288 = vpop.f32.mrf.mxu0
      %1289 = vmatprep.mubr.bf16.mxu0 0
      %1290 = vmatmul.mubr.bf16.gmra.mxu0 %v586
      %v1291 = vpop.f32.mrf.mxu0
      %v1292 = vadd.f32 0.0, %v1291
      %v1293 = vpop.f32.mrf.mxu0
      %v1294 = vpop.f32.mrf.mxu0
      %v1295 = vadd.f32 0.0, %v1294
      %v1296 = vpop.f32.mrf.mxu0
      %1297 = vmatprep.mubr.bf16.mxu0 0
      %1298 = vmatmul.mubr.bf16.gmra.mxu0 %v589
      %v1299 = vpop.f32.mrf.mxu0
      %v1300 = vadd.f32 0.0, %v1299
      %v1301 = vpop.f32.mrf.mxu0
      %v1302 = vpop.f32.mrf.mxu0
      %v1303 = vadd.f32 0.0, %v1302
      %v1304 = vpop.f32.mrf.mxu0
      %1305 = vmatprep.mubr.bf16.mxu0 0
      %1306 = vmatmul.mubr.bf16.gmra.mxu0 %v592
      %v1307 = vpop.f32.mrf.mxu0
      %v1308 = vadd.f32 0.0, %v1307
      %v1309 = vpop.f32.mrf.mxu0
      %v1310 = vpop.f32.mrf.mxu0
      %v1311 = vadd.f32 0.0, %v1310
      %v1312 = vpop.f32.mrf.mxu0
      %1313 = vmatprep.mubr.bf16.mxu0 0
      %1314 = vmatmul.mubr.bf16.gmra.mxu0 %v595
      %v1315 = vpop.f32.mrf.mxu0
      %v1316 = vadd.f32 0.0, %v1315
      %v1317 = vpop.f32.mrf.mxu0
      %v1318 = vpop.f32.mrf.mxu0
      %v1319 = vadd.f32 0.0, %v1318
      %v1320 = vpop.f32.mrf.mxu0
      %1321 = vmatprep.mubr.bf16.mxu0 0
      %1322 = vmatmul.mubr.bf16.gmra.mxu0 %v598
      %v1323 = vpop.f32.mrf.mxu0
      %v1324 = vadd.f32 0.0, %v1323
      %v1325 = vpop.f32.mrf.mxu0
      %v1326 = vpop.f32.mrf.mxu0
      %v1327 = vadd.f32 0.0, %v1326
      %v1328 = vpop.f32.mrf.mxu0
      %1329 = vmatprep.mubr.bf16.mxu0 0
      %1330 = vmatmul.mubr.bf16.gmra.mxu0 %v601
      %v1331 = vpop.f32.mrf.mxu0
      %v1332 = vadd.f32 0.0, %v1331
      %v1333 = vpop.f32.mrf.mxu0
      %v1334 = vpop.f32.mrf.mxu0
      %v1335 = vadd.f32 0.0, %v1334
      %v1336 = vpop.f32.mrf.mxu0
      %1337 = vmatprep.mubr.bf16.mxu0 0
      %1338 = vmatmul.mubr.bf16.gmra.mxu0 %v604
      %v1339 = vpop.f32.mrf.mxu0
      %v1340 = vadd.f32 0.0, %v1339
      %v1341 = vpop.f32.mrf.mxu0
      %v1342 = vpop.f32.mrf.mxu0
      %v1343 = vadd.f32 0.0, %v1342
      %v1344 = vpop.f32.mrf.mxu0
      %1345 = vmatprep.mubr.bf16.mxu0 0
      %1346 = vmatmul.mubr.bf16.gmra.mxu0 %v607
      %v1347 = vpop.f32.mrf.mxu0
      %v1348 = vadd.f32 0.0, %v1347
      %v1349 = vpop.f32.mrf.mxu0
      %v1350 = vpop.f32.mrf.mxu0
      %v1351 = vadd.f32 0.0, %v1350
      %v1352 = vpop.f32.mrf.mxu0
      %1353 = vmatprep.mubr.bf16.mxu0 0
      %1354 = vmatmul.mubr.bf16.gmra.mxu0 %v753
      %v1355 = vpop.f32.mrf.mxu0
      %v1356 = vadd.f32 0.0, %v1355
      %v1357 = vpop.f32.mrf.mxu0
      %v1358 = vpop.f32.mrf.mxu0
      %v1359 = vadd.f32 0.0, %v1358
      %v1360 = vpop.f32.mrf.mxu0
      %1361 = vmatprep.mubr.bf16.mxu0 0
      %1362 = vmatmul.mubr.bf16.gmra.mxu0 %v756
      %v1363 = vpop.f32.mrf.mxu0
      %v1364 = vadd.f32 0.0, %v1363
      %v1365 = vpop.f32.mrf.mxu0
      %v1366 = vpop.f32.mrf.mxu0
      %v1367 = vadd.f32 0.0, %v1366
      %v1368 = vpop.f32.mrf.mxu0
      %1369 = vmatprep.mubr.bf16.mxu0 0
      %1370 = vmatmul.mubr.bf16.gmra.mxu0 %v759
      %v1371 = vpop.f32.mrf.mxu0
      %v1372 = vadd.f32 0.0, %v1371
      %v1373 = vpop.f32.mrf.mxu0
      %v1374 = vpop.f32.mrf.mxu0
      %v1375 = vadd.f32 0.0, %v1374
      %v1376 = vpop.f32.mrf.mxu0
      %1377 = vmatprep.mubr.bf16.mxu0 0
      %1378 = vmatmul.mubr.bf16.gmra.mxu0 %v1244
      %v1379 = vpop.f32.mrf.mxu0
      %v1380 = vadd.f32 0.0, %v1379
      %v1381 = vpop.f32.mrf.mxu0
      %v1382 = vpop.f32.mrf.mxu0
      %v1383 = vpop.f32.mrf.mxu0
      %1384 = vdwg.mxu0
      %v1385 = vadd.f32 %v1137, %v1284
      %v1386 = vadd.f32 %v1140, %v1287
      %v1387 = vadd.f32 %v1145, %v1292
      %v1388 = vadd.f32 %v1148, %v1295
      %v1389 = vadd.f32 %v1153, %v1300
      %v1390 = vadd.f32 %v1156, %v1303
      %v1391 = vadd.f32 %v1161, %v1308
      %v1392 = vadd.f32 %v1164, %v1311
      %v1393 = vadd.f32 %v1169, %v1316
      %v1394 = vadd.f32 %v1172, %v1319
      %v1395 = vadd.f32 %v1177, %v1324
      %v1396 = vadd.f32 %v1180, %v1327
      %v1397 = vadd.f32 %v1185, %v1332
      %v1398 = vadd.f32 %v1188, %v1335
      %v1399 = vadd.f32 %v1193, %v1340
      %v1400 = vadd.f32 %v1196, %v1343
      %v1401 = vadd.f32 %v1201, %v1348
      %v1402 = vadd.f32 %v1204, %v1351
      %v1403 = vadd.f32 %v1209, %v1356
      %v1404 = vadd.f32 %v1212, %v1359
      %v1405 = vadd.f32 %v1217, %v1364
      %v1406 = vadd.f32 %v1220, %v1367
      %v1407 = vadd.f32 %v1225, %v1372
      %v1408 = vadd.f32 %v1228, %v1375
      %v1409 = vadd.f32 %v1233, %v1380
      %vm1435 = vcmask 1046528
      %v1436 = vrot.slane %v1385, 1
      %v1437 = vrot.slane %v1386, 1
      %v1438 = vsel %vm1435, %v1436, %v1437
      %v1439 = vrot.slane %v1387, 1
      %v1440 = vsel %vm1435, %v1437, %v1439
      %v1441 = vrot.slane %v1388, 1
      %v1442 = vsel %vm1435, %v1439, %v1441
      %v1443 = vrot.slane %v1389, 1
      %v1444 = vsel %vm1435, %v1441, %v1443
      %v1445 = vrot.slane %v1390, 1
      %v1446 = vsel %vm1435, %v1443, %v1445
      %v1447 = vrot.slane %v1391, 1
      %v1448 = vsel %vm1435, %v1445, %v1447
      %v1449 = vrot.slane %v1392, 1
      %v1450 = vsel %vm1435, %v1447, %v1449
      %v1451 = vrot.slane %v1393, 1
      %v1452 = vsel %vm1435, %v1449, %v1451
      %v1453 = vrot.slane %v1394, 1
      %v1454 = vsel %vm1435, %v1451, %v1453
      %v1455 = vrot.slane %v1395, 1
      %v1456 = vsel %vm1435, %v1453, %v1455
      %v1457 = vrot.slane %v1396, 1
      %v1458 = vsel %vm1435, %v1455, %v1457
      %v1459 = vrot.slane %v1397, 1
      %v1460 = vsel %vm1435, %v1457, %v1459
      %v1461 = vrot.slane %v1398, 1
      %v1462 = vsel %vm1435, %v1459, %v1461
      %v1463 = vrot.slane %v1399, 1
      %v1464 = vsel %vm1435, %v1461, %v1463
      %v1465 = vrot.slane %v1400, 1
      %v1466 = vsel %vm1435, %v1463, %v1465
      %v1467 = vrot.slane %v1401, 1
      %v1468 = vsel %vm1435, %v1465, %v1467
      %v1469 = vrot.slane %v1402, 1
      %v1470 = vsel %vm1435, %v1467, %v1469
      %v1471 = vrot.slane %v1403, 1
      %v1472 = vsel %vm1435, %v1469, %v1471
      %v1473 = vrot.slane %v1404, 1
      %v1474 = vsel %vm1435, %v1471, %v1473
      %v1475 = vrot.slane %v1405, 1
      %v1476 = vsel %vm1435, %v1473, %v1475
      %v1477 = vrot.slane %v1406, 1
      %v1478 = vsel %vm1435, %v1475, %v1477
      %v1479 = vrot.slane %v1407, 1
      %v1480 = vsel %vm1435, %v1477, %v1479
      %v1481 = vrot.slane %v1408, 1
      %v1482 = vsel %vm1435, %v1479, %v1481
      %v1483 = vrot.slane %v1409, 1
      %v1484 = vsel %vm1435, %v1481, %v1483
      %v1509 = vadd.f32 %v924, %v1438
      %v1510 = vadd.f32 %v925, %v1440
      %v1511 = vadd.f32 %v926, %v1442
      %v1512 = vadd.f32 %v927, %v1444
      %v1513 = vadd.f32 %v928, %v1446
      %v1514 = vadd.f32 %v929, %v1448
      %v1515 = vadd.f32 %v930, %v1450
      %v1516 = vadd.f32 %v931, %v1452
      %v1517 = vadd.f32 %v932, %v1454
      %v1518 = vadd.f32 %v933, %v1456
      %v1519 = vadd.f32 %v934, %v1458
      %v1520 = vadd.f32 %v935, %v1460
      %v1521 = vadd.f32 %v936, %v1462
      %v1522 = vadd.f32 %v937, %v1464
      %v1523 = vadd.f32 %v938, %v1466
      %v1524 = vadd.f32 %v939, %v1468
      %v1525 = vadd.f32 %v940, %v1470
      %v1526 = vadd.f32 %v941, %v1472
      %v1527 = vadd.f32 %v942, %v1474
      %v1528 = vadd.f32 %v943, %v1476
      %v1529 = vadd.f32 %v944, %v1478
      %v1530 = vadd.f32 %v945, %v1480
      %v1531 = vadd.f32 %v946, %v1482
      %v1532 = vadd.f32 %v947, %v1484
      %s1533 = scalar_lea.vmem %s1, 4
      %v1534 = vld [vmem:[%s1533] sm:$0x3]
      %s1535 = scalar_lea.vmem %s1, 10
      %v1536 = vld [vmem:[%s1535] sm:$0x3]
      %v1538 = vsel %vm422, %v1536, 0
      %1540 = vmatprep.subr.bf16.mxu0 0
      %1541 = vmatpush1.bf16.msra.mxu0 0
      %1542 = vmatprep.subr.bf16.mxu0 0
      %1543 = vmatpush1.bf16.msra.mxu0 0
      %1544 = vmatprep.subr.bf16.mxu0 0
      %1545 = vmatpush1.bf16.msra.mxu0 0
      %1546 = vmatprep.subr.bf16.mxu0 0
      %1547 = vmatpush1.bf16.msra.mxu0 0
      %1548 = vmatprep.subr.bf16.mxu0 0
      %1549 = vmatpush1.bf16.msra.mxu0 0
      %1550 = vmatprep.subr.bf16.mxu0 0
      %1551 = vmatpush1.bf16.msra.mxu0 0
      %1552 = vmatprep.subr.bf16.mxu0 0
      %1553 = vmatpush1.bf16.msra.mxu0 0
      %1554 = vmatprep.subr.bf16.mxu0 0
      %1555 = vmatpush1.bf16.msra.mxu0 %v1538
      %1556 = vmatprep.subr.bf16.mxu0 0
      %1557 = vmatpush2.bf16.msra.mxu0 0
      %1558 = vmatprep.subr.bf16.mxu0 0
      %1559 = vmatpush2.bf16.msra.mxu0 0
      %1560 = vmatprep.subr.bf16.mxu0 0
      %1561 = vmatpush2.bf16.msra.mxu0 0
      %1562 = vmatprep.subr.bf16.mxu0 0
      %1563 = vmatpush2.bf16.msra.mxu0 0
      %1564 = vmatprep.subr.bf16.mxu0 0
      %1565 = vmatpush2.bf16.msra.mxu0 0
      %1566 = vmatprep.subr.bf16.mxu0 0
      %1567 = vmatpush2.bf16.msra.mxu0 0
      %1568 = vmatprep.subr.bf16.mxu0 0
      %1569 = vmatpush2.bf16.msra.mxu0 0
      %1570 = vmatprep.subr.bf16.mxu0 0
      %1571 = vmatpush2.bf16.msra.mxu0 0
      %1572 = vmatprep.mubr.bf16.mxu0 0
      %1573 = vmatmul.mubr.bf16.gmra.mxu0 %v387
      %v1574 = vpop.f32.mrf.mxu0
      %v1575 = vadd.f32 0.0, %v1574
      %v1576 = vpop.f32.mrf.mxu0
      %v1577 = vpop.f32.mrf.mxu0
      %v1578 = vadd.f32 0.0, %v1577
      %v1579 = vpop.f32.mrf.mxu0
      %1580 = vmatprep.mubr.bf16.mxu0 0
      %1581 = vmatmul.mubr.bf16.gmra.mxu0 %v390
      %v1582 = vpop.f32.mrf.mxu0
      %v1583 = vadd.f32 0.0, %v1582
      %v1584 = vpop.f32.mrf.mxu0
      %v1585 = vpop.f32.mrf.mxu0
      %v1586 = vadd.f32 0.0, %v1585
      %v1587 = vpop.f32.mrf.mxu0
      %1588 = vmatprep.mubr.bf16.mxu0 0
      %1589 = vmatmul.mubr.bf16.gmra.mxu0 %v393
      %v1590 = vpop.f32.mrf.mxu0
      %v1591 = vadd.f32 0.0, %v1590
      %v1592 = vpop.f32.mrf.mxu0
      %v1593 = vpop.f32.mrf.mxu0
      %v1594 = vadd.f32 0.0, %v1593
      %v1595 = vpop.f32.mrf.mxu0
      %1596 = vmatprep.mubr.bf16.mxu0 0
      %1597 = vmatmul.mubr.bf16.gmra.mxu0 %v396
      %v1598 = vpop.f32.mrf.mxu0
      %v1599 = vadd.f32 0.0, %v1598
      %v1600 = vpop.f32.mrf.mxu0
      %v1601 = vpop.f32.mrf.mxu0
      %v1602 = vadd.f32 0.0, %v1601
      %v1603 = vpop.f32.mrf.mxu0
      %1604 = vmatprep.mubr.bf16.mxu0 0
      %1605 = vmatmul.mubr.bf16.gmra.mxu0 %v399
      %v1606 = vpop.f32.mrf.mxu0
      %v1607 = vadd.f32 0.0, %v1606
      %v1608 = vpop.f32.mrf.mxu0
      %v1609 = vpop.f32.mrf.mxu0
      %v1610 = vadd.f32 0.0, %v1609
      %v1611 = vpop.f32.mrf.mxu0
      %1612 = vmatprep.mubr.bf16.mxu0 0
      %1613 = vmatmul.mubr.bf16.gmra.mxu0 %v402
      %v1614 = vpop.f32.mrf.mxu0
      %v1615 = vadd.f32 0.0, %v1614
      %v1616 = vpop.f32.mrf.mxu0
      %v1617 = vpop.f32.mrf.mxu0
      %v1618 = vadd.f32 0.0, %v1617
      %v1619 = vpop.f32.mrf.mxu0
      %1620 = vmatprep.mubr.bf16.mxu0 0
      %1621 = vmatmul.mubr.bf16.gmra.mxu0 %v405
      %v1622 = vpop.f32.mrf.mxu0
      %v1623 = vadd.f32 0.0, %v1622
      %v1624 = vpop.f32.mrf.mxu0
      %v1625 = vpop.f32.mrf.mxu0
      %v1626 = vadd.f32 0.0, %v1625
      %v1627 = vpop.f32.mrf.mxu0
      %1628 = vmatprep.mubr.bf16.mxu0 0
      %1629 = vmatmul.mubr.bf16.gmra.mxu0 %v408
      %v1630 = vpop.f32.mrf.mxu0
      %v1631 = vadd.f32 0.0, %v1630
      %v1632 = vpop.f32.mrf.mxu0
      %v1633 = vpop.f32.mrf.mxu0
      %v1634 = vadd.f32 0.0, %v1633
      %v1635 = vpop.f32.mrf.mxu0
      %1636 = vmatprep.mubr.bf16.mxu0 0
      %1637 = vmatmul.mubr.bf16.gmra.mxu0 %v411
      %v1638 = vpop.f32.mrf.mxu0
      %v1639 = vadd.f32 0.0, %v1638
      %v1640 = vpop.f32.mrf.mxu0
      %v1641 = vpop.f32.mrf.mxu0
      %v1642 = vadd.f32 0.0, %v1641
      %v1643 = vpop.f32.mrf.mxu0
      %1644 = vmatprep.mubr.bf16.mxu0 0
      %1645 = vmatmul.mubr.bf16.gmra.mxu0 %v414
      %v1646 = vpop.f32.mrf.mxu0
      %v1647 = vadd.f32 0.0, %v1646
      %v1648 = vpop.f32.mrf.mxu0
      %v1649 = vpop.f32.mrf.mxu0
      %v1650 = vadd.f32 0.0, %v1649
      %v1651 = vpop.f32.mrf.mxu0
      %1652 = vmatprep.mubr.bf16.mxu0 0
      %1653 = vmatmul.mubr.bf16.gmra.mxu0 %v417
      %v1654 = vpop.f32.mrf.mxu0
      %v1655 = vadd.f32 0.0, %v1654
      %v1656 = vpop.f32.mrf.mxu0
      %v1657 = vpop.f32.mrf.mxu0
      %v1658 = vadd.f32 0.0, %v1657
      %v1659 = vpop.f32.mrf.mxu0
      %1660 = vmatprep.mubr.bf16.mxu0 0
      %1661 = vmatmul.mubr.bf16.gmra.mxu0 %v420
      %v1662 = vpop.f32.mrf.mxu0
      %v1663 = vadd.f32 0.0, %v1662
      %v1664 = vpop.f32.mrf.mxu0
      %v1665 = vpop.f32.mrf.mxu0
      %v1666 = vadd.f32 0.0, %v1665
      %v1667 = vpop.f32.mrf.mxu0
      %1668 = vmatprep.mubr.bf16.mxu0 0
      %1669 = vmatmul.mubr.bf16.gmra.mxu0 %v954
      %v1670 = vpop.f32.mrf.mxu0
      %v1671 = vadd.f32 0.0, %v1670
      %v1672 = vpop.f32.mrf.mxu0
      %v1673 = vpop.f32.mrf.mxu0
      %v1674 = vpop.f32.mrf.mxu0
      %1675 = vdwg.mxu0
      %v1677 = vsel %vm422, %v1534, 0
      %1679 = vmatprep.subr.bf16.mxu0 0
      %1680 = vmatpush1.bf16.msra.mxu0 0
      %1681 = vmatprep.subr.bf16.mxu0 0
      %1682 = vmatpush1.bf16.msra.mxu0 0
      %1683 = vmatprep.subr.bf16.mxu0 0
      %1684 = vmatpush1.bf16.msra.mxu0 0
      %1685 = vmatprep.subr.bf16.mxu0 0
      %1686 = vmatpush1.bf16.msra.mxu0 0
      %1687 = vmatprep.subr.bf16.mxu0 0
      %1688 = vmatpush1.bf16.msra.mxu0 0
      %1689 = vmatprep.subr.bf16.mxu0 0
      %1690 = vmatpush1.bf16.msra.mxu0 0
      %1691 = vmatprep.subr.bf16.mxu0 0
      %1692 = vmatpush1.bf16.msra.mxu0 0
      %1693 = vmatprep.subr.bf16.mxu0 0
      %1694 = vmatpush1.bf16.msra.mxu0 %v1677
      %1695 = vmatprep.subr.bf16.mxu0 0
      %1696 = vmatpush2.bf16.msra.mxu0 0
      %1697 = vmatprep.subr.bf16.mxu0 0
      %1698 = vmatpush2.bf16.msra.mxu0 0
      %1699 = vmatprep.subr.bf16.mxu0 0
      %1700 = vmatpush2.bf16.msra.mxu0 0
      %1701 = vmatprep.subr.bf16.mxu0 0
      %1702 = vmatpush2.bf16.msra.mxu0 0
      %1703 = vmatprep.subr.bf16.mxu0 0
      %1704 = vmatpush2.bf16.msra.mxu0 0
      %1705 = vmatprep.subr.bf16.mxu0 0
      %1706 = vmatpush2.bf16.msra.mxu0 0
      %1707 = vmatprep.subr.bf16.mxu0 0
      %1708 = vmatpush2.bf16.msra.mxu0 0
      %1709 = vmatprep.subr.bf16.mxu0 0
      %1710 = vmatpush2.bf16.msra.mxu0 0
      %1711 = vmatprep.mubr.bf16.mxu0 0
      %1712 = vmatmul.mubr.bf16.gmra.mxu0 %v574
      %v1713 = vpop.f32.mrf.mxu0
      %v1714 = vadd.f32 %v1575, %v1713
      %v1715 = vpop.f32.mrf.mxu0
      %v1716 = vpop.f32.mrf.mxu0
      %v1717 = vadd.f32 %v1578, %v1716
      %v1718 = vpop.f32.mrf.mxu0
      %1719 = vmatprep.mubr.bf16.mxu0 0
      %1720 = vmatmul.mubr.bf16.gmra.mxu0 %v577
      %v1721 = vpop.f32.mrf.mxu0
      %v1722 = vadd.f32 %v1583, %v1721
      %v1723 = vpop.f32.mrf.mxu0
      %v1724 = vpop.f32.mrf.mxu0
      %v1725 = vadd.f32 %v1586, %v1724
      %v1726 = vpop.f32.mrf.mxu0
      %1727 = vmatprep.mubr.bf16.mxu0 0
      %1728 = vmatmul.mubr.bf16.gmra.mxu0 %v580
      %v1729 = vpop.f32.mrf.mxu0
      %v1730 = vadd.f32 %v1591, %v1729
      %v1731 = vpop.f32.mrf.mxu0
      %v1732 = vpop.f32.mrf.mxu0
      %v1733 = vadd.f32 %v1594, %v1732
      %v1734 = vpop.f32.mrf.mxu0
      %1735 = vmatprep.mubr.bf16.mxu0 0
      %1736 = vmatmul.mubr.bf16.gmra.mxu0 %v583
      %v1737 = vpop.f32.mrf.mxu0
      %v1738 = vadd.f32 %v1599, %v1737
      %v1739 = vpop.f32.mrf.mxu0
      %v1740 = vpop.f32.mrf.mxu0
      %v1741 = vadd.f32 %v1602, %v1740
      %v1742 = vpop.f32.mrf.mxu0
      %1743 = vmatprep.mubr.bf16.mxu0 0
      %1744 = vmatmul.mubr.bf16.gmra.mxu0 %v586
      %v1745 = vpop.f32.mrf.mxu0
      %v1746 = vadd.f32 %v1607, %v1745
      %v1747 = vpop.f32.mrf.mxu0
      %v1748 = vpop.f32.mrf.mxu0
      %v1749 = vadd.f32 %v1610, %v1748
      %v1750 = vpop.f32.mrf.mxu0
      %1751 = vmatprep.mubr.bf16.mxu0 0
      %1752 = vmatmul.mubr.bf16.gmra.mxu0 %v589
      %v1753 = vpop.f32.mrf.mxu0
      %v1754 = vadd.f32 %v1615, %v1753
      %v1755 = vpop.f32.mrf.mxu0
      %v1756 = vpop.f32.mrf.mxu0
      %v1757 = vadd.f32 %v1618, %v1756
      %v1758 = vpop.f32.mrf.mxu0
      %1759 = vmatprep.mubr.bf16.mxu0 0
      %1760 = vmatmul.mubr.bf16.gmra.mxu0 %v592
      %v1761 = vpop.f32.mrf.mxu0
      %v1762 = vadd.f32 %v1623, %v1761
      %v1763 = vpop.f32.mrf.mxu0
      %v1764 = vpop.f32.mrf.mxu0
      %v1765 = vadd.f32 %v1626, %v1764
      %v1766 = vpop.f32.mrf.mxu0
      %1767 = vmatprep.mubr.bf16.mxu0 0
      %1768 = vmatmul.mubr.bf16.gmra.mxu0 %v595
      %v1769 = vpop.f32.mrf.mxu0
      %v1770 = vadd.f32 %v1631, %v1769
      %v1771 = vpop.f32.mrf.mxu0
      %v1772 = vpop.f32.mrf.mxu0
      %v1773 = vadd.f32 %v1634, %v1772
      %v1774 = vpop.f32.mrf.mxu0
      %1775 = vmatprep.mubr.bf16.mxu0 0
      %1776 = vmatmul.mubr.bf16.gmra.mxu0 %v598
      %v1777 = vpop.f32.mrf.mxu0
      %v1778 = vadd.f32 %v1639, %v1777
      %v1779 = vpop.f32.mrf.mxu0
      %v1780 = vpop.f32.mrf.mxu0
      %v1781 = vadd.f32 %v1642, %v1780
      %v1782 = vpop.f32.mrf.mxu0
      %1783 = vmatprep.mubr.bf16.mxu0 0
      %1784 = vmatmul.mubr.bf16.gmra.mxu0 %v601
      %v1785 = vpop.f32.mrf.mxu0
      %v1786 = vadd.f32 %v1647, %v1785
      %v1787 = vpop.f32.mrf.mxu0
      %v1788 = vpop.f32.mrf.mxu0
      %v1789 = vadd.f32 %v1650, %v1788
      %v1790 = vpop.f32.mrf.mxu0
      %1791 = vmatprep.mubr.bf16.mxu0 0
      %1792 = vmatmul.mubr.bf16.gmra.mxu0 %v604
      %v1793 = vpop.f32.mrf.mxu0
      %v1794 = vadd.f32 %v1655, %v1793
      %v1795 = vpop.f32.mrf.mxu0
      %v1796 = vpop.f32.mrf.mxu0
      %v1797 = vadd.f32 %v1658, %v1796
      %v1798 = vpop.f32.mrf.mxu0
      %1799 = vmatprep.mubr.bf16.mxu0 0
      %1800 = vmatmul.mubr.bf16.gmra.mxu0 %v607
      %v1801 = vpop.f32.mrf.mxu0
      %v1802 = vadd.f32 %v1663, %v1801
      %v1803 = vpop.f32.mrf.mxu0
      %v1804 = vpop.f32.mrf.mxu0
      %v1805 = vadd.f32 %v1666, %v1804
      %v1806 = vpop.f32.mrf.mxu0
      %1807 = vmatprep.mubr.bf16.mxu0 0
      %1808 = vmatmul.mubr.bf16.gmra.mxu0 %v1097
      %v1809 = vpop.f32.mrf.mxu0
      %v1810 = vadd.f32 %v1671, %v1809
      %v1811 = vpop.f32.mrf.mxu0
      %v1812 = vpop.f32.mrf.mxu0
      %v1813 = vpop.f32.mrf.mxu0
      %1814 = vdwg.mxu0
      %s1815 = scalar_lea.vmem %s1, 16
      %v1816 = vld [vmem:[%s1815] sm:$0x3]
      %v1818 = vsel %vm422, %v1816, 0
      %1820 = vmatprep.subr.bf16.mxu0 0
      %1821 = vmatpush1.bf16.msra.mxu0 0
      %1822 = vmatprep.subr.bf16.mxu0 0
      %1823 = vmatpush1.bf16.msra.mxu0 0
      %1824 = vmatprep.subr.bf16.mxu0 0
      %1825 = vmatpush1.bf16.msra.mxu0 0
      %1826 = vmatprep.subr.bf16.mxu0 0
      %1827 = vmatpush1.bf16.msra.mxu0 0
      %1828 = vmatprep.subr.bf16.mxu0 0
      %1829 = vmatpush1.bf16.msra.mxu0 0
      %1830 = vmatprep.subr.bf16.mxu0 0
      %1831 = vmatpush1.bf16.msra.mxu0 0
      %1832 = vmatprep.subr.bf16.mxu0 0
      %1833 = vmatpush1.bf16.msra.mxu0 0
      %1834 = vmatprep.subr.bf16.mxu0 0
      %1835 = vmatpush1.bf16.msra.mxu0 %v1818
      %1836 = vmatprep.subr.bf16.mxu0 0
      %1837 = vmatpush2.bf16.msra.mxu0 0
      %1838 = vmatprep.subr.bf16.mxu0 0
      %1839 = vmatpush2.bf16.msra.mxu0 0
      %1840 = vmatprep.subr.bf16.mxu0 0
      %1841 = vmatpush2.bf16.msra.mxu0 0
      %1842 = vmatprep.subr.bf16.mxu0 0
      %1843 = vmatpush2.bf16.msra.mxu0 0
      %1844 = vmatprep.subr.bf16.mxu0 0
      %1845 = vmatpush2.bf16.msra.mxu0 0
      %1846 = vmatprep.subr.bf16.mxu0 0
      %1847 = vmatpush2.bf16.msra.mxu0 0
      %1848 = vmatprep.subr.bf16.mxu0 0
      %1849 = vmatpush2.bf16.msra.mxu0 0
      %1850 = vmatprep.subr.bf16.mxu0 0
      %1851 = vmatpush2.bf16.msra.mxu0 0
      %1852 = vmatprep.mubr.bf16.mxu0 0
      %1853 = vmatmul.mubr.bf16.gmra.mxu0 %v583
      %v1854 = vpop.f32.mrf.mxu0
      %v1855 = vadd.f32 0.0, %v1854
      %v1856 = vpop.f32.mrf.mxu0
      %v1857 = vpop.f32.mrf.mxu0
      %v1858 = vadd.f32 0.0, %v1857
      %v1859 = vpop.f32.mrf.mxu0
      %1860 = vmatprep.mubr.bf16.mxu0 0
      %1861 = vmatmul.mubr.bf16.gmra.mxu0 %v586
      %v1862 = vpop.f32.mrf.mxu0
      %v1863 = vadd.f32 0.0, %v1862
      %v1864 = vpop.f32.mrf.mxu0
      %v1865 = vpop.f32.mrf.mxu0
      %v1866 = vadd.f32 0.0, %v1865
      %v1867 = vpop.f32.mrf.mxu0
      %1868 = vmatprep.mubr.bf16.mxu0 0
      %1869 = vmatmul.mubr.bf16.gmra.mxu0 %v589
      %v1870 = vpop.f32.mrf.mxu0
      %v1871 = vadd.f32 0.0, %v1870
      %v1872 = vpop.f32.mrf.mxu0
      %v1873 = vpop.f32.mrf.mxu0
      %v1874 = vadd.f32 0.0, %v1873
      %v1875 = vpop.f32.mrf.mxu0
      %1876 = vmatprep.mubr.bf16.mxu0 0
      %1877 = vmatmul.mubr.bf16.gmra.mxu0 %v592
      %v1878 = vpop.f32.mrf.mxu0
      %v1879 = vadd.f32 0.0, %v1878
      %v1880 = vpop.f32.mrf.mxu0
      %v1881 = vpop.f32.mrf.mxu0
      %v1882 = vadd.f32 0.0, %v1881
      %v1883 = vpop.f32.mrf.mxu0
      %1884 = vmatprep.mubr.bf16.mxu0 0
      %1885 = vmatmul.mubr.bf16.gmra.mxu0 %v595
      %v1886 = vpop.f32.mrf.mxu0
      %v1887 = vadd.f32 0.0, %v1886
      %v1888 = vpop.f32.mrf.mxu0
      %v1889 = vpop.f32.mrf.mxu0
      %v1890 = vadd.f32 0.0, %v1889
      %v1891 = vpop.f32.mrf.mxu0
      %1892 = vmatprep.mubr.bf16.mxu0 0
      %1893 = vmatmul.mubr.bf16.gmra.mxu0 %v598
      %v1894 = vpop.f32.mrf.mxu0
      %v1895 = vadd.f32 0.0, %v1894
      %v1896 = vpop.f32.mrf.mxu0
      %v1897 = vpop.f32.mrf.mxu0
      %v1898 = vadd.f32 0.0, %v1897
      %v1899 = vpop.f32.mrf.mxu0
      %1900 = vmatprep.mubr.bf16.mxu0 0
      %1901 = vmatmul.mubr.bf16.gmra.mxu0 %v601
      %v1902 = vpop.f32.mrf.mxu0
      %v1903 = vadd.f32 0.0, %v1902
      %v1904 = vpop.f32.mrf.mxu0
      %v1905 = vpop.f32.mrf.mxu0
      %v1906 = vadd.f32 0.0, %v1905
      %v1907 = vpop.f32.mrf.mxu0
      %1908 = vmatprep.mubr.bf16.mxu0 0
      %1909 = vmatmul.mubr.bf16.gmra.mxu0 %v604
      %v1910 = vpop.f32.mrf.mxu0
      %v1911 = vadd.f32 0.0, %v1910
      %v1912 = vpop.f32.mrf.mxu0
      %v1913 = vpop.f32.mrf.mxu0
      %v1914 = vadd.f32 0.0, %v1913
      %v1915 = vpop.f32.mrf.mxu0
      %1916 = vmatprep.mubr.bf16.mxu0 0
      %1917 = vmatmul.mubr.bf16.gmra.mxu0 %v607
      %v1918 = vpop.f32.mrf.mxu0
      %v1919 = vadd.f32 0.0, %v1918
      %v1920 = vpop.f32.mrf.mxu0
      %v1921 = vpop.f32.mrf.mxu0
      %v1922 = vadd.f32 0.0, %v1921
      %v1923 = vpop.f32.mrf.mxu0
      %1924 = vmatprep.mubr.bf16.mxu0 0
      %1925 = vmatmul.mubr.bf16.gmra.mxu0 %v753
      %v1926 = vpop.f32.mrf.mxu0
      %v1927 = vadd.f32 0.0, %v1926
      %v1928 = vpop.f32.mrf.mxu0
      %v1929 = vpop.f32.mrf.mxu0
      %v1930 = vadd.f32 0.0, %v1929
      %v1931 = vpop.f32.mrf.mxu0
      %1932 = vmatprep.mubr.bf16.mxu0 0
      %1933 = vmatmul.mubr.bf16.gmra.mxu0 %v756
      %v1934 = vpop.f32.mrf.mxu0
      %v1935 = vadd.f32 0.0, %v1934
      %v1936 = vpop.f32.mrf.mxu0
      %v1937 = vpop.f32.mrf.mxu0
      %v1938 = vadd.f32 0.0, %v1937
      %v1939 = vpop.f32.mrf.mxu0
      %1940 = vmatprep.mubr.bf16.mxu0 0
      %1941 = vmatmul.mubr.bf16.gmra.mxu0 %v759
      %v1942 = vpop.f32.mrf.mxu0
      %v1943 = vadd.f32 0.0, %v1942
      %v1944 = vpop.f32.mrf.mxu0
      %v1945 = vpop.f32.mrf.mxu0
      %v1946 = vadd.f32 0.0, %v1945
      %v1947 = vpop.f32.mrf.mxu0
      %1948 = vmatprep.mubr.bf16.mxu0 0
      %1949 = vmatmul.mubr.bf16.gmra.mxu0 %v1244
      %v1950 = vpop.f32.mrf.mxu0
      %v1951 = vadd.f32 0.0, %v1950
      %v1952 = vpop.f32.mrf.mxu0
      %v1953 = vpop.f32.mrf.mxu0
      %v1954 = vpop.f32.mrf.mxu0
      %1955 = vdwg.mxu0
      %v1956 = vadd.f32 %v1714, %v1855
      %v1957 = vadd.f32 %v1717, %v1858
      %v1958 = vadd.f32 %v1722, %v1863
      %v1959 = vadd.f32 %v1725, %v1866
      %v1960 = vadd.f32 %v1730, %v1871
      %v1961 = vadd.f32 %v1733, %v1874
      %v1962 = vadd.f32 %v1738, %v1879
      %v1963 = vadd.f32 %v1741, %v1882
      %v1964 = vadd.f32 %v1746, %v1887
      %v1965 = vadd.f32 %v1749, %v1890
      %v1966 = vadd.f32 %v1754, %v1895
      %v1967 = vadd.f32 %v1757, %v1898
      %v1968 = vadd.f32 %v1762, %v1903
      %v1969 = vadd.f32 %v1765, %v1906
      %v1970 = vadd.f32 %v1770, %v1911
      %v1971 = vadd.f32 %v1773, %v1914
      %v1972 = vadd.f32 %v1778, %v1919
      %v1973 = vadd.f32 %v1781, %v1922
      %v1974 = vadd.f32 %v1786, %v1927
      %v1975 = vadd.f32 %v1789, %v1930
      %v1976 = vadd.f32 %v1794, %v1935
      %v1977 = vadd.f32 %v1797, %v1938
      %v1978 = vadd.f32 %v1802, %v1943
      %v1979 = vadd.f32 %v1805, %v1946
      %v1980 = vadd.f32 %v1810, %v1951
      %vm2006 = vcmask 1045504
      %v2007 = vrot.slane %v1956, 2
      %v2008 = vrot.slane %v1957, 2
      %v2009 = vsel %vm2006, %v2007, %v2008
      %v2010 = vrot.slane %v1958, 2
      %v2011 = vsel %vm2006, %v2008, %v2010
      %v2012 = vrot.slane %v1959, 2
      %v2013 = vsel %vm2006, %v2010, %v2012
      %v2014 = vrot.slane %v1960, 2
      %v2015 = vsel %vm2006, %v2012, %v2014
      %v2016 = vrot.slane %v1961, 2
      %v2017 = vsel %vm2006, %v2014, %v2016
      %v2018 = vrot.slane %v1962, 2
      %v2019 = vsel %vm2006, %v2016, %v2018
      %v2020 = vrot.slane %v1963, 2
      %v2021 = vsel %vm2006, %v2018, %v2020
      %v2022 = vrot.slane %v1964, 2
      %v2023 = vsel %vm2006, %v2020, %v2022
      %v2024 = vrot.slane %v1965, 2
      %v2025 = vsel %vm2006, %v2022, %v2024
      %v2026 = vrot.slane %v1966, 2
      %v2027 = vsel %vm2006, %v2024, %v2026
      %v2028 = vrot.slane %v1967, 2
      %v2029 = vsel %vm2006, %v2026, %v2028
      %v2030 = vrot.slane %v1968, 2
      %v2031 = vsel %vm2006, %v2028, %v2030
      %v2032 = vrot.slane %v1969, 2
      %v2033 = vsel %vm2006, %v2030, %v2032
      %v2034 = vrot.slane %v1970, 2
      %v2035 = vsel %vm2006, %v2032, %v2034
      %v2036 = vrot.slane %v1971, 2
      %v2037 = vsel %vm2006, %v2034, %v2036
      %v2038 = vrot.slane %v1972, 2
      %v2039 = vsel %vm2006, %v2036, %v2038
      %v2040 = vrot.slane %v1973, 2
      %v2041 = vsel %vm2006, %v2038, %v2040
      %v2042 = vrot.slane %v1974, 2
      %v2043 = vsel %vm2006, %v2040, %v2042
      %v2044 = vrot.slane %v1975, 2
      %v2045 = vsel %vm2006, %v2042, %v2044
      %v2046 = vrot.slane %v1976, 2
      %v2047 = vsel %vm2006, %v2044, %v2046
      %v2048 = vrot.slane %v1977, 2
      %v2049 = vsel %vm2006, %v2046, %v2048
      %v2050 = vrot.slane %v1978, 2
      %v2051 = vsel %vm2006, %v2048, %v2050
      %v2052 = vrot.slane %v1979, 2
      %v2053 = vsel %vm2006, %v2050, %v2052
      %v2054 = vrot.slane %v1980, 2
      %v2055 = vsel %vm2006, %v2052, %v2054
      %v2080 = vadd.f32 %v1509, %v2009
      %v2081 = vadd.f32 %v1510, %v2011
      %v2082 = vadd.f32 %v1511, %v2013
      %v2083 = vadd.f32 %v1512, %v2015
      %v2084 = vadd.f32 %v1513, %v2017
      %v2085 = vadd.f32 %v1514, %v2019
      %v2086 = vadd.f32 %v1515, %v2021
      %v2087 = vadd.f32 %v1516, %v2023
      %v2088 = vadd.f32 %v1517, %v2025
      %v2089 = vadd.f32 %v1518, %v2027
      %v2090 = vadd.f32 %v1519, %v2029
      %v2091 = vadd.f32 %v1520, %v2031
      %v2092 = vadd.f32 %v1521, %v2033
      %v2093 = vadd.f32 %v1522, %v2035
      %v2094 = vadd.f32 %v1523, %v2037
      %v2095 = vadd.f32 %v1524, %v2039
      %v2096 = vadd.f32 %v1525, %v2041
      %v2097 = vadd.f32 %v1526, %v2043
      %v2098 = vadd.f32 %v1527, %v2045
      %v2099 = vadd.f32 %v1528, %v2047
      %v2100 = vadd.f32 %v1529, %v2049
      %v2101 = vadd.f32 %v1530, %v2051
      %v2102 = vadd.f32 %v1531, %v2053
      %v2103 = vadd.f32 %v1532, %v2055
      %v2104 = vmul.f32 %v2080, %v2080
      %v2105 = vmul.f32 %v2081, %v2081
      %v2106 = vmul.f32 %v2082, %v2082
      %v2107 = vmul.f32 %v2083, %v2083
      %v2108 = vmul.f32 %v2084, %v2084
      %v2109 = vmul.f32 %v2085, %v2085
      %v2110 = vmul.f32 %v2086, %v2086
      %v2111 = vmul.f32 %v2087, %v2087
      %v2112 = vmul.f32 %v2088, %v2088
      %v2113 = vmul.f32 %v2089, %v2089
      %v2114 = vmul.f32 %v2090, %v2090
      %v2115 = vmul.f32 %v2091, %v2091
      %v2116 = vmul.f32 %v2092, %v2092
      %v2117 = vmul.f32 %v2093, %v2093
      %v2118 = vmul.f32 %v2094, %v2094
      %v2119 = vmul.f32 %v2095, %v2095
      %v2120 = vmul.f32 %v2096, %v2096
      %v2121 = vmul.f32 %v2097, %v2097
      %v2122 = vmul.f32 %v2098, %v2098
      %v2123 = vmul.f32 %v2099, %v2099
      %v2124 = vmul.f32 %v2100, %v2100
      %v2125 = vmul.f32 %v2101, %v2101
      %v2126 = vmul.f32 %v2102, %v2102
      %v2127 = vmul.f32 %v2103, %v2103
      %vm2128 = vcmask 64512
      %v2129 = vsel %vm2128, %v2104, 0.0
      %2130 = vadd.xlane.f32.xlu0 %v2129
      %v2131 = vpop.xlane.xlu0 %2130
      %v2132 = vsel %vm2128, %v2105, 0.0
      %2133 = vadd.xlane.f32.xlu0 %v2132
      %v2134 = vpop.xlane.xlu0 %2133
      %v2135 = vsel %vm2128, %v2106, 0.0
      %2136 = vadd.xlane.f32.xlu0 %v2135
      %v2137 = vpop.xlane.xlu0 %2136
      %v2138 = vsel %vm2128, %v2107, 0.0
      %2139 = vadd.xlane.f32.xlu0 %v2138
      %v2140 = vpop.xlane.xlu0 %2139
      %v2141 = vsel %vm2128, %v2108, 0.0
      %2142 = vadd.xlane.f32.xlu0 %v2141
      %v2143 = vpop.xlane.xlu0 %2142
      %v2144 = vsel %vm2128, %v2109, 0.0
      %2145 = vadd.xlane.f32.xlu0 %v2144
      %v2146 = vpop.xlane.xlu0 %2145
      %v2147 = vsel %vm2128, %v2110, 0.0
      %2148 = vadd.xlane.f32.xlu0 %v2147
      %v2149 = vpop.xlane.xlu0 %2148
      %v2150 = vsel %vm2128, %v2111, 0.0
      %2151 = vadd.xlane.f32.xlu0 %v2150
      %v2152 = vpop.xlane.xlu0 %2151
      %v2153 = vsel %vm2128, %v2112, 0.0
      %2154 = vadd.xlane.f32.xlu0 %v2153
      %v2155 = vpop.xlane.xlu0 %2154
      %v2156 = vsel %vm2128, %v2113, 0.0
      %2157 = vadd.xlane.f32.xlu0 %v2156
      %v2158 = vpop.xlane.xlu0 %2157
      %v2159 = vsel %vm2128, %v2114, 0.0
      %2160 = vadd.xlane.f32.xlu0 %v2159
      %v2161 = vpop.xlane.xlu0 %2160
      %v2162 = vsel %vm2128, %v2115, 0.0
      %2163 = vadd.xlane.f32.xlu0 %v2162
      %v2164 = vpop.xlane.xlu0 %2163
      %v2165 = vsel %vm2128, %v2116, 0.0
      %2166 = vadd.xlane.f32.xlu0 %v2165
      %v2167 = vpop.xlane.xlu0 %2166
      %v2168 = vsel %vm2128, %v2117, 0.0
      %2169 = vadd.xlane.f32.xlu0 %v2168
      %v2170 = vpop.xlane.xlu0 %2169
      %v2171 = vsel %vm2128, %v2118, 0.0
      %2172 = vadd.xlane.f32.xlu0 %v2171
      %v2173 = vpop.xlane.xlu0 %2172
      %v2174 = vsel %vm2128, %v2119, 0.0
      %2175 = vadd.xlane.f32.xlu0 %v2174
      %v2176 = vpop.xlane.xlu0 %2175
      %v2177 = vsel %vm2128, %v2120, 0.0
      %2178 = vadd.xlane.f32.xlu0 %v2177
      %v2179 = vpop.xlane.xlu0 %2178
      %v2180 = vsel %vm2128, %v2121, 0.0
      %2181 = vadd.xlane.f32.xlu0 %v2180
      %v2182 = vpop.xlane.xlu0 %2181
      %v2183 = vsel %vm2128, %v2122, 0.0
      %2184 = vadd.xlane.f32.xlu0 %v2183
      %v2185 = vpop.xlane.xlu0 %2184
      %v2186 = vsel %vm2128, %v2123, 0.0
      %2187 = vadd.xlane.f32.xlu0 %v2186
      %v2188 = vpop.xlane.xlu0 %2187
      %v2189 = vsel %vm2128, %v2124, 0.0
      %2190 = vadd.xlane.f32.xlu0 %v2189
      %v2191 = vpop.xlane.xlu0 %2190
      %v2192 = vsel %vm2128, %v2125, 0.0
      %2193 = vadd.xlane.f32.xlu0 %v2192
      %v2194 = vpop.xlane.xlu0 %2193
      %v2195 = vsel %vm2128, %v2126, 0.0
      %2196 = vadd.xlane.f32.xlu0 %v2195
      %v2197 = vpop.xlane.xlu0 %2196
      %v2198 = vsel %vm2128, %v2127, 0.0
      %2199 = vadd.xlane.f32.xlu0 %v2198
      %v2200 = vpop.xlane.xlu0 %2199
      %v2201 = vmax.f32 %v2131, 1e-24
      %v2202 = vmax.f32 %v2134, 1e-24
      %v2203 = vmax.f32 %v2137, 1e-24
      %v2204 = vmax.f32 %v2140, 1e-24
      %v2205 = vmax.f32 %v2143, 1e-24
      %v2206 = vmax.f32 %v2146, 1e-24
      %v2207 = vmax.f32 %v2149, 1e-24
      %v2208 = vmax.f32 %v2152, 1e-24
      %v2209 = vmax.f32 %v2155, 1e-24
      %v2210 = vmax.f32 %v2158, 1e-24
      %v2211 = vmax.f32 %v2161, 1e-24
      %v2212 = vmax.f32 %v2164, 1e-24
      %v2213 = vmax.f32 %v2167, 1e-24
      %v2214 = vmax.f32 %v2170, 1e-24
      %v2215 = vmax.f32 %v2173, 1e-24
      %v2216 = vmax.f32 %v2176, 1e-24
      %v2217 = vmax.f32 %v2179, 1e-24
      %v2218 = vmax.f32 %v2182, 1e-24
      %v2219 = vmax.f32 %v2185, 1e-24
      %v2220 = vmax.f32 %v2188, 1e-24
      %v2221 = vmax.f32 %v2191, 1e-24
      %v2222 = vmax.f32 %v2194, 1e-24
      %v2223 = vmax.f32 %v2197, 1e-24
      %v2224 = vmax.f32 %v2200, 1e-24
      %v2225 = vrsqrt.pop %v2201
      %v2226 = vrsqrt.pop %v2202
      %v2227 = vrsqrt.pop %v2203
      %v2228 = vrsqrt.pop %v2204
      %v2229 = vrsqrt.pop %v2205
      %v2230 = vrsqrt.pop %v2206
      %v2231 = vrsqrt.pop %v2207
      %v2232 = vrsqrt.pop %v2208
      %v2233 = vrsqrt.pop %v2209
      %v2234 = vrsqrt.pop %v2210
      %v2235 = vrsqrt.pop %v2211
      %v2236 = vrsqrt.pop %v2212
      %v2237 = vrsqrt.pop %v2213
      %v2238 = vrsqrt.pop %v2214
      %v2239 = vrsqrt.pop %v2215
      %v2240 = vrsqrt.pop %v2216
      %v2241 = vrsqrt.pop %v2217
      %v2242 = vrsqrt.pop %v2218
      %v2243 = vrsqrt.pop %v2219
      %v2244 = vrsqrt.pop %v2220
      %v2245 = vrsqrt.pop %v2221
      %v2246 = vrsqrt.pop %v2222
      %v2247 = vrsqrt.pop %v2223
      %v2248 = vrsqrt.pop %v2224
      %v2249 = vmul.f32 %v2080, %v2225
      %v2250 = vmul.f32 %v2081, %v2226
      %v2251 = vmul.f32 %v2082, %v2227
      %v2252 = vmul.f32 %v2083, %v2228
      %v2253 = vmul.f32 %v2084, %v2229
      %v2254 = vmul.f32 %v2085, %v2230
      %v2255 = vmul.f32 %v2086, %v2231
      %v2256 = vmul.f32 %v2087, %v2232
      %v2257 = vmul.f32 %v2088, %v2233
      %v2258 = vmul.f32 %v2089, %v2234
      %v2259 = vmul.f32 %v2090, %v2235
      %v2260 = vmul.f32 %v2091, %v2236
      %v2261 = vmul.f32 %v2092, %v2237
      %v2262 = vmul.f32 %v2093, %v2238
      %v2263 = vmul.f32 %v2094, %v2239
      %v2264 = vmul.f32 %v2095, %v2240
      %v2265 = vmul.f32 %v2096, %v2241
      %v2266 = vmul.f32 %v2097, %v2242
      %v2267 = vmul.f32 %v2098, %v2243
      %v2268 = vmul.f32 %v2099, %v2244
      %v2269 = vmul.f32 %v2100, %v2245
      %v2270 = vmul.f32 %v2101, %v2246
      %v2271 = vmul.f32 %v2102, %v2247
      %v2272 = vmul.f32 %v2103, %v2248
      %v2273 = vld [vmem:[%s276] sm:$0x1]
      %v2275 = vlaneseq
      %v2276 = vshrl.u32 %v2275, 7
      %v2277 = vsub.s32 0, %v2276
      %v2278 = vrot.slane %v2273, %v2277
      %v2280 = vmul.f32 %v2249, %v2278
      %v2281 = vmul.f32 %v2250, %v2278
      %v2282 = vmul.f32 %v2251, %v2278
      %v2283 = vmul.f32 %v2252, %v2278
      %v2284 = vmul.f32 %v2253, %v2278
      %v2285 = vmul.f32 %v2254, %v2278
      %v2286 = vmul.f32 %v2255, %v2278
      %v2287 = vmul.f32 %v2256, %v2278
      %v2288 = vmul.f32 %v2257, %v2278
      %v2289 = vmul.f32 %v2258, %v2278
      %v2290 = vmul.f32 %v2259, %v2278
      %v2291 = vmul.f32 %v2260, %v2278
      %v2292 = vmul.f32 %v2261, %v2278
      %v2293 = vmul.f32 %v2262, %v2278
      %v2294 = vmul.f32 %v2263, %v2278
      %v2295 = vmul.f32 %v2264, %v2278
      %v2296 = vmul.f32 %v2265, %v2278
      %v2297 = vmul.f32 %v2266, %v2278
      %v2298 = vmul.f32 %v2267, %v2278
      %v2299 = vmul.f32 %v2268, %v2278
      %v2300 = vmul.f32 %v2269, %v2278
      %v2301 = vmul.f32 %v2270, %v2278
      %v2302 = vmul.f32 %v2271, %v2278
      %v2303 = vmul.f32 %v2272, %v2278
      %v2304 = vld [vmem:[%s279] sm:$0x1]
      %v2306 = vlaneseq
      %v2307 = vshrl.u32 %v2306, 7
      %v2308 = vsub.s32 0, %v2307
      %v2309 = vrot.slane %v2304, %v2308
      %v2311 = vadd.f32 %v2280, %v2309
      %v2312 = vadd.f32 %v2281, %v2309
      %v2313 = vadd.f32 %v2282, %v2309
      %v2314 = vadd.f32 %v2283, %v2309
      %v2315 = vadd.f32 %v2284, %v2309
      %v2316 = vadd.f32 %v2285, %v2309
      %v2317 = vadd.f32 %v2286, %v2309
      %v2318 = vadd.f32 %v2287, %v2309
      %v2319 = vadd.f32 %v2288, %v2309
      %v2320 = vadd.f32 %v2289, %v2309
      %v2321 = vadd.f32 %v2290, %v2309
      %v2322 = vadd.f32 %v2291, %v2309
      %v2323 = vadd.f32 %v2292, %v2309
      %v2324 = vadd.f32 %v2293, %v2309
      %v2325 = vadd.f32 %v2294, %v2309
      %v2326 = vadd.f32 %v2295, %v2309
      %v2327 = vadd.f32 %v2296, %v2309
      %v2328 = vadd.f32 %v2297, %v2309
      %v2329 = vadd.f32 %v2298, %v2309
      %v2330 = vadd.f32 %v2299, %v2309
      %v2331 = vadd.f32 %v2300, %v2309
      %v2332 = vadd.f32 %v2301, %v2309
      %v2333 = vadd.f32 %v2302, %v2309
      %v2334 = vadd.f32 %v2303, %v2309
      %v2335 = vxor.u32 %v2311, 2147483648
      %v2336 = vxor.u32 %v2312, 2147483648
      %v2337 = vxor.u32 %v2313, 2147483648
      %v2338 = vxor.u32 %v2314, 2147483648
      %v2339 = vxor.u32 %v2315, 2147483648
      %v2340 = vxor.u32 %v2316, 2147483648
      %v2341 = vxor.u32 %v2317, 2147483648
      %v2342 = vxor.u32 %v2318, 2147483648
      %v2343 = vxor.u32 %v2319, 2147483648
      %v2344 = vxor.u32 %v2320, 2147483648
      %v2345 = vxor.u32 %v2321, 2147483648
      %v2346 = vxor.u32 %v2322, 2147483648
      %v2347 = vxor.u32 %v2323, 2147483648
      %v2348 = vxor.u32 %v2324, 2147483648
      %v2349 = vxor.u32 %v2325, 2147483648
      %v2350 = vxor.u32 %v2326, 2147483648
      %v2351 = vxor.u32 %v2327, 2147483648
      %v2352 = vxor.u32 %v2328, 2147483648
      %v2353 = vxor.u32 %v2329, 2147483648
      %v2354 = vxor.u32 %v2330, 2147483648
      %v2355 = vxor.u32 %v2331, 2147483648
      %v2356 = vxor.u32 %v2332, 2147483648
      %v2357 = vxor.u32 %v2333, 2147483648
      %v2358 = vxor.u32 %v2334, 2147483648
      %v2359 = vmul.f32 %v2335, 1.442695
      %v2360 = vpow.pop %v2359
      %v2361 = vmul.f32 %v2336, 1.442695
      %v2362 = vpow.pop %v2361
      %v2363 = vmul.f32 %v2337, 1.442695
      %v2364 = vpow.pop %v2363
      %v2365 = vmul.f32 %v2338, 1.442695
      %v2366 = vpow.pop %v2365
      %v2367 = vmul.f32 %v2339, 1.442695
      %v2368 = vpow.pop %v2367
      %v2369 = vmul.f32 %v2340, 1.442695
      %v2370 = vpow.pop %v2369
      %v2371 = vmul.f32 %v2341, 1.442695
      %v2372 = vpow.pop %v2371
      %v2373 = vmul.f32 %v2342, 1.442695
      %v2374 = vpow.pop %v2373
      %v2375 = vmul.f32 %v2343, 1.442695
      %v2376 = vpow.pop %v2375
      %v2377 = vmul.f32 %v2344, 1.442695
      %v2378 = vpow.pop %v2377
      %v2379 = vmul.f32 %v2345, 1.442695
      %v2380 = vpow.pop %v2379
      %v2381 = vmul.f32 %v2346, 1.442695
      %v2382 = vpow.pop %v2381
      %v2383 = vmul.f32 %v2347, 1.442695
      %v2384 = vpow.pop %v2383
      %v2385 = vmul.f32 %v2348, 1.442695
      %v2386 = vpow.pop %v2385
      %v2387 = vmul.f32 %v2349, 1.442695
      %v2388 = vpow.pop %v2387
      %v2389 = vmul.f32 %v2350, 1.442695
      %v2390 = vpow.pop %v2389
      %v2391 = vmul.f32 %v2351, 1.442695
      %v2392 = vpow.pop %v2391
      %v2393 = vmul.f32 %v2352, 1.442695
      %v2394 = vpow.pop %v2393
      %v2395 = vmul.f32 %v2353, 1.442695
      %v2396 = vpow.pop %v2395
      %v2397 = vmul.f32 %v2354, 1.442695
      %v2398 = vpow.pop %v2397
      %v2399 = vmul.f32 %v2355, 1.442695
      %v2400 = vpow.pop %v2399
      %v2401 = vmul.f32 %v2356, 1.442695
      %v2402 = vpow.pop %v2401
      %v2403 = vmul.f32 %v2357, 1.442695
      %v2404 = vpow.pop %v2403
      %v2405 = vmul.f32 %v2358, 1.442695
      %v2406 = vpow.pop %v2405
      %v2407 = vadd.f32 %v2360, 1.0
      %v2408 = vadd.f32 %v2362, 1.0
      %v2409 = vadd.f32 %v2364, 1.0
      %v2410 = vadd.f32 %v2366, 1.0
      %v2411 = vadd.f32 %v2368, 1.0
      %v2412 = vadd.f32 %v2370, 1.0
      %v2413 = vadd.f32 %v2372, 1.0
      %v2414 = vadd.f32 %v2374, 1.0
      %v2415 = vadd.f32 %v2376, 1.0
      %v2416 = vadd.f32 %v2378, 1.0
      %v2417 = vadd.f32 %v2380, 1.0
      %v2418 = vadd.f32 %v2382, 1.0
      %v2419 = vadd.f32 %v2384, 1.0
      %v2420 = vadd.f32 %v2386, 1.0
      %v2421 = vadd.f32 %v2388, 1.0
      %v2422 = vadd.f32 %v2390, 1.0
      %v2423 = vadd.f32 %v2392, 1.0
      %v2424 = vadd.f32 %v2394, 1.0
      %v2425 = vadd.f32 %v2396, 1.0
      %v2426 = vadd.f32 %v2398, 1.0
      %v2427 = vadd.f32 %v2400, 1.0
      %v2428 = vadd.f32 %v2402, 1.0
      %v2429 = vadd.f32 %v2404, 1.0
      %v2430 = vadd.f32 %v2406, 1.0
      %v2431 = vrcp.pop %v2407
      %v2432 = vmul.f32 1.0, %v2431
      %v2433 = vrcp.pop %v2408
      %v2434 = vmul.f32 1.0, %v2433
      %v2435 = vrcp.pop %v2409
      %v2436 = vmul.f32 1.0, %v2435
      %v2437 = vrcp.pop %v2410
      %v2438 = vmul.f32 1.0, %v2437
      %v2439 = vrcp.pop %v2411
      %v2440 = vmul.f32 1.0, %v2439
      %v2441 = vrcp.pop %v2412
      %v2442 = vmul.f32 1.0, %v2441
      %v2443 = vrcp.pop %v2413
      %v2444 = vmul.f32 1.0, %v2443
      %v2445 = vrcp.pop %v2414
      %v2446 = vmul.f32 1.0, %v2445
      %v2447 = vrcp.pop %v2415
      %v2448 = vmul.f32 1.0, %v2447
      %v2449 = vrcp.pop %v2416
      %v2450 = vmul.f32 1.0, %v2449
      %v2451 = vrcp.pop %v2417
      %v2452 = vmul.f32 1.0, %v2451
      %v2453 = vrcp.pop %v2418
      %v2454 = vmul.f32 1.0, %v2453
      %v2455 = vrcp.pop %v2419
      %v2456 = vmul.f32 1.0, %v2455
      %v2457 = vrcp.pop %v2420
      %v2458 = vmul.f32 1.0, %v2457
      %v2459 = vrcp.pop %v2421
      %v2460 = vmul.f32 1.0, %v2459
      %v2461 = vrcp.pop %v2422
      %v2462 = vmul.f32 1.0, %v2461
      %v2463 = vrcp.pop %v2423
      %v2464 = vmul.f32 1.0, %v2463
      %v2465 = vrcp.pop %v2424
      %v2466 = vmul.f32 1.0, %v2465
      %v2467 = vrcp.pop %v2425
      %v2468 = vmul.f32 1.0, %v2467
      %v2469 = vrcp.pop %v2426
      %v2470 = vmul.f32 1.0, %v2469
      %v2471 = vrcp.pop %v2427
      %v2472 = vmul.f32 1.0, %v2471
      %v2473 = vrcp.pop %v2428
      %v2474 = vmul.f32 1.0, %v2473
      %v2475 = vrcp.pop %v2429
      %v2476 = vmul.f32 1.0, %v2475
      %v2477 = vrcp.pop %v2430
      %v2478 = vmul.f32 1.0, %v2477
      %v2479 = vmul.f32 %v2311, %v2432
      %v2480 = vmul.f32 %v2312, %v2434
      %v2481 = vmul.f32 %v2313, %v2436
      %v2482 = vmul.f32 %v2314, %v2438
      %v2483 = vmul.f32 %v2315, %v2440
      %v2484 = vmul.f32 %v2316, %v2442
      %v2485 = vmul.f32 %v2317, %v2444
      %v2486 = vmul.f32 %v2318, %v2446
      %v2487 = vmul.f32 %v2319, %v2448
      %v2488 = vmul.f32 %v2320, %v2450
      %v2489 = vmul.f32 %v2321, %v2452
      %v2490 = vmul.f32 %v2322, %v2454
      %v2491 = vmul.f32 %v2323, %v2456
      %v2492 = vmul.f32 %v2324, %v2458
      %v2493 = vmul.f32 %v2325, %v2460
      %v2494 = vmul.f32 %v2326, %v2462
      %v2495 = vmul.f32 %v2327, %v2464
      %v2496 = vmul.f32 %v2328, %v2466
      %v2497 = vmul.f32 %v2329, %v2468
      %v2498 = vmul.f32 %v2330, %v2470
      %v2499 = vmul.f32 %v2331, %v2472
      %v2500 = vmul.f32 %v2332, %v2474
      %v2501 = vmul.f32 %v2333, %v2476
      %v2502 = vmul.f32 %v2334, %v2478
      %2503 = vst.msk [vmem:[%s288] sm:$0xff] %vm2128, %v2479
      %2504 = vst.msk [vmem:[%s288 + $0x8] sm:$0xff] %vm2128, %v2480
      %2505 = vst.msk [vmem:[%s288 + $0x10] sm:$0xff] %vm2128, %v2481
      %2506 = vst.msk [vmem:[%s288 + $0x18] sm:$0xff] %vm2128, %v2482
      %2507 = vst.msk [vmem:[%s288 + $0x20] sm:$0xff] %vm2128, %v2483
      %2508 = vst.msk [vmem:[%s288 + $0x28] sm:$0xff] %vm2128, %v2484
      %2509 = vst.msk [vmem:[%s288 + $0x30] sm:$0xff] %vm2128, %v2485
      %2510 = vst.msk [vmem:[%s288 + $0x38] sm:$0xff] %vm2128, %v2486
      %2511 = vst.msk [vmem:[%s288 + $0x40] sm:$0xff] %vm2128, %v2487
      %2512 = vst.msk [vmem:[%s288 + $0x48] sm:$0xff] %vm2128, %v2488
      %2513 = vst.msk [vmem:[%s288 + $0x50] sm:$0xff] %vm2128, %v2489
      %2514 = vst.msk [vmem:[%s288 + $0x58] sm:$0xff] %vm2128, %v2490
      %2515 = vst.msk [vmem:[%s288 + $0x60] sm:$0xff] %vm2128, %v2491
      %2516 = vst.msk [vmem:[%s288 + $0x68] sm:$0xff] %vm2128, %v2492
      %2517 = vst.msk [vmem:[%s288 + $0x70] sm:$0xff] %vm2128, %v2493
      %2518 = vst.msk [vmem:[%s288 + $0x78] sm:$0xff] %vm2128, %v2494
      %2519 = vst.msk [vmem:[%s288 + $0x80] sm:$0xff] %vm2128, %v2495
      %2520 = vst.msk [vmem:[%s288 + $0x88] sm:$0xff] %vm2128, %v2496
      %2521 = vst.msk [vmem:[%s288 + $0x90] sm:$0xff] %vm2128, %v2497
      %2522 = vst.msk [vmem:[%s288 + $0x98] sm:$0xff] %vm2128, %v2498
      %2523 = vst.msk [vmem:[%s288 + $0xa0] sm:$0xff] %vm2128, %v2499
      %2524 = vst.msk [vmem:[%s288 + $0xa8] sm:$0xff] %vm2128, %v2500
      %2525 = vst.msk [vmem:[%s288 + $0xb0] sm:$0xff] %vm2128, %v2501
      %2526 = vst.msk [vmem:[%s288 + $0xb8] sm:$0xff] %vm2128, %v2502
      %s2527 = smul.u32 24, %s21
      %p2528 = scmp.lt.s32.totalorder %s20, 1
      %s2529 = scalar_select %p2528, %s20, 1
      %p2530 = scmp.lt.s32.totalorder %s2527, 47
      %s2531 = scalar_select %p2530, %s2527, 47
      %s2532 = smul.addr %s2529, 48
      %s2533 = sadd.s32 %s2531, %s2532
      %s2534 = smul.addr %s2533, 8
      %s2535 = scalar_lea.vmem %s5, %s2534
      // Predicated region
      $region41: #{tpu_custom_call.1} parent=39 // pred_check
        %p2536 = pneg %p170
      $region42: #{tpu_custom_call.1} parent=39 // pred_check_branch
        %2538 = sbr.rel (%p2536) target = $region44
      $region43: #{tpu_custom_call.1} parent=39 // pred_region
        %s2539 = smul.u32 24, %s21
      $region44: #{tpu_custom_call.1} parent=39 // pred_fallthru
        _
    $region40: #{tpu_custom_call.1} parent=5 // pred_fallthru
      _
    %p2540 = scmp.le.s32.totalorder 2, %s11
    // Predicated region
    $region45: #{tpu_custom_call.1} parent=5 // pred_check
      %p2541 = pneg %p2540
    $region46: #{tpu_custom_call.1} parent=5 // pred_check_branch
      %2543 = sbr.rel (%p2541) target = $region48
    $region47: #{tpu_custom_call.1} parent=5 // pred_region
      %s2544 = ssub.s32 %s11, 2
      // Predicated region
      $region49: #{tpu_custom_call.1} parent=47 // pred_check
        %p2545 = pneg %p176
      $region50: #{tpu_custom_call.1} parent=47 // pred_check_branch
        %2547 = sbr.rel (%p2545) target = $region52
      $region51: #{tpu_custom_call.1} parent=47 // pred_region
        %s2548 = smul.u32 24, %s23
        %p2549 = scmp.lt.s32.totalorder %s22, 1
        %s2550 = scalar_select %p2549, %s22, 1
        %p2551 = scmp.lt.s32.totalorder %s2548, 47
        %s2552 = scalar_select %p2551, %s2548, 47
        %s2553 = smul.addr %s2550, 48
        %s2554 = sadd.s32 %s2552, %s2553
        %s2555 = smul.addr %s2554, 8
        %s2556 = scalar_lea.vmem %s5, %s2555
      $region52: #{tpu_custom_call.1} parent=47 // pred_fallthru
        _
    $region48: #{tpu_custom_call.1} parent=5 // pred_fallthru
      _
  $region6: #{tpu_custom_call.1} parent=0 // loop_footer
    %s15 = sadd.s32 1, %s11
  $region7: #{tpu_custom_call.1} parent=0 // loop_footer_branch
    %10 = sbr.rel target = $region3
  $region8: #{tpu_custom_call.1} parent=0 // loop_exit
    _

</llo_original>
